<compile_context>
chip_gen: v7x
topology: tpu7x:2x2x1
jax: 0.10.0
libtpu: 0.0.40
codegen_flags: <defaults>
</compile_context>

<pallas_src>
import math
import numpy as np
import jax
import jax.numpy as jnp
from jax.experimental import pallas as pl
from jax.experimental.pallas import tpu as pltpu

L = 4                       # PE frequency bands (positional_encoding_3d(..., 4))
PE_DIM = 3 * L              # 12 per (coord-set, sin/cos) group
IN_DIM = 4 * PE_DIM         # 48 MLP input features
OUT_PAD = 128               # last layer padded from 2 -> 128 lanes (lane-dense store)
# Linear layer sizes of MLP_Etot_module (13 Linear layers, ReLU between all of them)
LAYER_DIMS = [(IN_DIM, 128)] + [(128, 128)] * 4 + \
             [(128, 256), (256, 512), (512, 256), (256, 128), (128, 64), (64, 2)]

_MAX_TILE_B = 1024          # cap: ~2 MiB widest f32 activation slab, safe on v5e/v6e/v7x
_MIN_SPLIT_B = 16           # below this a second grid step is pure overhead
_VMEM_LIMIT = 32 * 1024 * 1024


# --------------------------------------------------------------------------------------
# Pallas kernel: folded PE (one dot + one sin) + 13-layer MLP, weights VMEM-resident.
# --------------------------------------------------------------------------------------
def mlp_tx_rx_kernel(pos_ref, s48_ref, off_ref, *rest):
    out_ref = rest[-1]
    params = rest[:-1]          # (w, b) pairs for all 13 Linear layers (last one padded)

    # angle = [tloc|rloc] @ S48 + OFF48 ; pe = sin(angle) gives the grouped
    # [sin_t(12) | cos_t(12) | sin_r(12) | cos_r(12)] features (cos(x) = sin(x + pi/2)).
    pe = jnp.sin(jnp.dot(pos_ref[...], s48_ref[...],
                         preferred_element_type=jnp.float32) + off_ref[...])

    x = pe
    for li in range(len(params) // 2):
        w = params[2 * li][...]             # bf16 (in, out)
        b = params[2 * li + 1][...]         # f32  (1, out)
        if li > 0:
            x = jnp.maximum(x, 0.0)         # ReLU before every Linear except the first
        x = jnp.dot(x.astype(w.dtype), w, preferred_element_type=jnp.float32) + b

    out_ref[...] = x.astype(out_ref.dtype)  # (tile_b, 128); cols 2..127 are zeros


# --------------------------------------------------------------------------------------
# Glue: parameter init (PyTorch Linear convention), layout/dtype conversion, PE folding.
# --------------------------------------------------------------------------------------
def init_torch_style_params(key):
    """Deterministic init mimicking nn.Linear default (U[-1/sqrt(fan_in), 1/sqrt(fan_in)]).
    Returns list of (W[out,in], b[out]) in PyTorch layout, f32."""
    params = []
    for fin, fout in LAYER_DIMS:
        key, kw, kb = jax.random.split(key, 3)
        bound = 1.0 / math.sqrt(fin)
        W = jax.random.uniform(kw, (fout, fin), jnp.float32, -bound, bound)
        b = jax.random.uniform(kb, (fout,), jnp.float32, -bound, bound)
        params.append((W, b))
    return params


def _interleave_permutation():
    """my_index for each torch input index p. Torch order: [t_pe(24), r_pe(24)], each block
    interleaved sin/cos per (coord i, freq j). My order: [sin_t|cos_t|sin_r|cos_r], i*L+j."""
    perm = np.empty(IN_DIM, dtype=np.int64)
    for p in range(IN_DIM):
        half, q = divmod(p, 2 * PE_DIM)          # t / r
        i, rem = divmod(q, 2 * L)                # coord
        j, k = divmod(rem, 2)                    # freq, sin(0)/cos(1)
        perm[p] = half * 2 * PE_DIM + k * PE_DIM + i * L + j
    return perm


def convert_params_for_kernel(torch_params):
    """PyTorch (out,in) weights -> kernel (in,out) bf16; fold the PE interleaving permutation
    into W1; zero-pad the last layer's out dim 2 -> 128. Biases become (1, out) f32."""
    kernel_params = []
    perm = _interleave_permutation()
    n_layers = len(torch_params)
    for li, (W, b) in enumerate(torch_params):
        WT = jnp.transpose(W)                                  # (in, out)
        bb = b.reshape(1, -1).astype(jnp.float32)
        if li == 0:
            WT = jnp.zeros_like(WT).at[perm, :].set(WT)        # rows -> grouped PE order
        if li == n_layers - 1:
            WT = jnp.pad(WT, ((0, 0), (0, OUT_PAD - WT.shape[1])))
            bb = jnp.pad(bb, ((0, 0), (0, OUT_PAD - bb.shape[1])))
        kernel_params += [WT.astype(jnp.bfloat16), bb]
    return kernel_params


def pc_normalize(pc):
    centroid = jnp.mean(pc, axis=0)
    pcc = pc - centroid
    m = jnp.max(jnp.sqrt(jnp.sum(pcc ** 2, axis=1)))
    return pcc / m, centroid, m


def _pe_base_constants_merged():
    """Static parts of the merged-PE fold (both position sets in one (6, 48) matrix):
    BASE[3*half + i, half*24 + {0,12} + i*L + j] = pi*2^j ; SHIFT on the cos columns."""
    base = np.zeros((6, IN_DIM), np.float32)
    shift = np.zeros((1, IN_DIM), np.float32)
    for half in range(2):
        for i in range(3):
            for j in range(L):
                f = math.pi * (2.0 ** j)
                col_sin = half * 2 * PE_DIM + i * L + j
                col_cos = half * 2 * PE_DIM + PE_DIM + i * L + j
                base[half * 3 + i, col_sin] = f
                base[half * 3 + i, col_cos] = f
                shift[0, col_cos] = math.pi / 2.0
    return base, shift


def fold_pe_constants(block_pcd):
    """Fold pc_normalize center/scale into the merged PE constants:
    angle = (pos - c)/s * freq (+ pi/2 for cos)  ==  [tloc|rloc] @ S48 + OFF48."""
    _, center, scale = pc_normalize(block_pcd[0])
    base, shift = _pe_base_constants_merged()
    base_j = jnp.asarray(base)
    s48 = (base_j / scale).astype(jnp.float32)                               # (6, 48)
    center6 = jnp.concatenate([center, center]).reshape(1, 6)
    off48 = ((-center6 @ base_j) / scale + jnp.asarray(shift)).astype(jnp.float32)  # (1, 48)
    return s48, off48


def _round_up(x, m):
    return ((x + m - 1) // m) * m


def _choose_tiling(B, tile_b=None):
    """Pick (tile_b, padded_b). Even number of grid steps (>=2) for moderate/large B so
    both v7x TensorCores get balanced work; minimal padding via tile_b=round_up(cdiv,8)."""
    if tile_b is not None:
        tile_b = _round_up(max(tile_b, 8), 8)
        return tile_b, _round_up(max(B, 1), tile_b)
    if B < _MIN_SPLIT_B:
        tile_b = _round_up(max(B, 1), 8)
        return tile_b, tile_b
    n_steps = max(2, pl.cdiv(B, _MAX_TILE_B))
    if n_steps % 2:
        n_steps += 1
    tile_b = _round_up(pl.cdiv(B, n_steps), 8)
    return tile_b, n_steps * tile_b


def mlp_tx_rx_e_forward(tloc, rloc, block_pcd, kernel_params, batch_size, n_scatters,
                        tile_b=None):
    rcube_ = jnp.zeros((batch_size, n_scatters, 3), jnp.float32)
    ckai = jnp.zeros((batch_size, n_scatters, 2), jnp.float32)

    B = tloc.shape[0]
    if B == 0:
        return [jnp.zeros((0, 2), jnp.float32), rcube_, rcube_, ckai]

    s48, off48 = fold_pe_constants(block_pcd)
    pos = jnp.concatenate([tloc, rloc], axis=-1)              # (B, 6)

    tile_b, padded_b = _choose_tiling(B, tile_b)
    if padded_b != B:
        pos = jnp.pad(pos, ((0, padded_b - B), (0, 0)))

    resident = [s48, off48] + list(kernel_params)             # VMEM-resident across steps

    def resident_spec(arr):
        return pl.BlockSpec(arr.shape, lambda i: (0, 0))

    gtot_padded = pl.pallas_call(
        mlp_tx_rx_kernel,
        out_shape=jax.ShapeDtypeStruct((padded_b, OUT_PAD), jnp.float32),
        grid=(padded_b // tile_b,),
        in_specs=[pl.BlockSpec((tile_b, 6), lambda i: (i, 0))]
                 + [resident_spec(a) for a in resident],
        out_specs=pl.BlockSpec((tile_b, OUT_PAD), lambda i: (i, 0)),
        compiler_params=pltpu.CompilerParams(
            dimension_semantics=("parallel",),
            vmem_limit_bytes=_VMEM_LIMIT),
    )(pos, *resident)
    gtot = gtot_padded[:B, :2]

    return [gtot, rcube_, rcube_, ckai]


# --------------------------------------------------------------------------------------
# References for verification.
# --------------------------------------------------------------------------------------
def reference_forward_torch(tloc, rloc, block_pcd, torch_params):
    """Literal f32 reproduction of the PyTorch forward."""
    _, center, m = pc_normalize(block_pcd[0])
    s = np.asarray((tloc - center) / m)
    f = np.asarray((rloc - center) / m)

    def pe(pos):
        B = pos.shape[0]
        out = np.zeros((B, 6 * L), np.float32)
        for i in range(3):
            for j in range(L):
                out[:, i * 2 * L + 2 * j] = np.sin((2.0 ** j) * math.pi * pos[:, i])
                out[:, i * 2 * L + 2 * j + 1] = np.cos((2.0 ** j) * math.pi * pos[:, i])
        return out

    x = jnp.asarray(np.concatenate([pe(s), pe(f)], axis=-1))
    for li, (W, b) in enumerate(torch_params):
        if li > 0:
            x = jnp.maximum(x, 0.0)
        x = x @ W.T + b
    return x


def reference_forward_bf16_path(tloc, rloc, block_pcd, kernel_params):
    """Pure-JAX mirror of the kernel's exact numeric path (bf16 weights/activations)."""
    s48, off48 = fold_pe_constants(block_pcd)
    pos = jnp.concatenate([tloc, rloc], axis=-1)
    x = jnp.sin(jnp.dot(pos, s48, preferred_element_type=jnp.float32) + off48)
    for li in range(len(kernel_params) // 2):
        w, b = kernel_params[2 * li], kernel_params[2 * li + 1]
        if li > 0:
            x = jnp.maximum(x, 0.0)
        x = jnp.dot(x.astype(jnp.bfloat16), w, preferred_element_type=jnp.float32) + b
    return x[:, :2]


if __name__ == "__main__":
    key = jax.random.PRNGKey(0)
    batch_size, n_scatters, n_points = 8, 4, 32

    k_t, k_r, k_pcd, k_params = jax.random.split(key, 4)
    tloc = jax.random.normal(k_t, (batch_size, 3), jnp.float32)
    rloc = jax.random.normal(k_r, (batch_size, 3), jnp.float32)
    block_pcd = jax.random.normal(k_pcd, (1, n_points, 3), jnp.float32)

    torch_params = init_torch_style_params(k_params)
    kernel_params = convert_params_for_kernel(torch_params)

    outs = mlp_tx_rx_e_forward(tloc, rloc, block_pcd, kernel_params,
                               batch_size, n_scatters)
    gtot, rcube_a, rcube_b, ckai = [jax.block_until_ready(o) for o in outs]

    # 1) Kernel machinery check: same bf16 numeric path in pure JAX (tight-ish tolerance).
    ref_bf16 = jax.block_until_ready(
        reference_forward_bf16_path(tloc, rloc, block_pcd, kernel_params))
    np.testing.assert_allclose(np.asarray(gtot), np.asarray(ref_bf16), rtol=2e-2, atol=2e-2)

    # 2) Semantics check vs the literal f32 PyTorch-style forward (bf16 weights -> looser).
    ref_f32 = jax.block_until_ready(
        reference_forward_torch(tloc, rloc, block_pcd, torch_params))
    np.testing.assert_allclose(np.asarray(gtot), np.asarray(ref_f32), rtol=5e-2, atol=5e-2)

    assert gtot.shape == (batch_size, 2)
    assert rcube_a.shape == (batch_size, n_scatters, 3)
    assert ckai.shape == (batch_size, n_scatters, 2)

    print("KERNEL_OK")
</pallas_src>

<mosaic_0001>
module attributes {stable_mosaic.version = 11 : i64} {
  func.func @mlp_tx_rx_kernel(%arg0: i32, %arg1: memref<8x6xf32, #tpu.memory_space<vmem>>, %arg2: memref<6x48xf32, #tpu.memory_space<vmem>>, %arg3: memref<1x48xf32, #tpu.memory_space<vmem>>, %arg4: memref<48x128xbf16, #tpu.memory_space<vmem>>, %arg5: memref<1x128xf32, #tpu.memory_space<vmem>>, %arg6: memref<128x128xbf16, #tpu.memory_space<vmem>>, %arg7: memref<1x128xf32, #tpu.memory_space<vmem>>, %arg8: memref<128x128xbf16, #tpu.memory_space<vmem>>, %arg9: memref<1x128xf32, #tpu.memory_space<vmem>>, %arg10: memref<128x128xbf16, #tpu.memory_space<vmem>>, %arg11: memref<1x128xf32, #tpu.memory_space<vmem>>, %arg12: memref<128x128xbf16, #tpu.memory_space<vmem>>, %arg13: memref<1x128xf32, #tpu.memory_space<vmem>>, %arg14: memref<128x256xbf16, #tpu.memory_space<vmem>>, %arg15: memref<1x256xf32, #tpu.memory_space<vmem>>, %arg16: memref<256x512xbf16, #tpu.memory_space<vmem>>, %arg17: memref<1x512xf32, #tpu.memory_space<vmem>>, %arg18: memref<512x256xbf16, #tpu.memory_space<vmem>>, %arg19: memref<1x256xf32, #tpu.memory_space<vmem>>, %arg20: memref<256x128xbf16, #tpu.memory_space<vmem>>, %arg21: memref<1x128xf32, #tpu.memory_space<vmem>>, %arg22: memref<128x64xbf16, #tpu.memory_space<vmem>>, %arg23: memref<1x64xf32, #tpu.memory_space<vmem>>, %arg24: memref<64x128xbf16, #tpu.memory_space<vmem>>, %arg25: memref<1x128xf32, #tpu.memory_space<vmem>>, %arg26: memref<8x128xf32, #tpu.memory_space<vmem>>) attributes {dimension_semantics = [#tpu.dimension_semantics<parallel>], iteration_bounds = array<i64: 1>, scalar_prefetch = 0 : i64, scratch_operands = 0 : i64, tpu.core_type = #tpu.core_type<tc>, window_params = [{transform_indices = @transform_0, window_bounds = array<i64: 8, 6>}, {pipeline_mode = #tpu.pipeline_mode<synchronous>, transform_indices = @transform_1, window_bounds = array<i64: 6, 48>}, {pipeline_mode = #tpu.pipeline_mode<synchronous>, transform_indices = @transform_2, window_bounds = array<i64: 1, 48>}, {pipeline_mode = #tpu.pipeline_mode<synchronous>, transform_indices = @transform_3, window_bounds = array<i64: 48, 128>}, {pipeline_mode = #tpu.pipeline_mode<synchronous>, transform_indices = @transform_4, window_bounds = array<i64: 1, 128>}, {pipeline_mode = #tpu.pipeline_mode<synchronous>, transform_indices = @transform_5, window_bounds = array<i64: 128, 128>}, {pipeline_mode = #tpu.pipeline_mode<synchronous>, transform_indices = @transform_6, window_bounds = array<i64: 1, 128>}, {pipeline_mode = #tpu.pipeline_mode<synchronous>, transform_indices = @transform_7, window_bounds = array<i64: 128, 128>}, {pipeline_mode = #tpu.pipeline_mode<synchronous>, transform_indices = @transform_8, window_bounds = array<i64: 1, 128>}, {pipeline_mode = #tpu.pipeline_mode<synchronous>, transform_indices = @transform_9, window_bounds = array<i64: 128, 128>}, {pipeline_mode = #tpu.pipeline_mode<synchronous>, transform_indices = @transform_10, window_bounds = array<i64: 1, 128>}, {pipeline_mode = #tpu.pipeline_mode<synchronous>, transform_indices = @transform_11, window_bounds = array<i64: 128, 128>}, {pipeline_mode = #tpu.pipeline_mode<synchronous>, transform_indices = @transform_12, window_bounds = array<i64: 1, 128>}, {pipeline_mode = #tpu.pipeline_mode<synchronous>, transform_indices = @transform_13, window_bounds = array<i64: 128, 256>}, {pipeline_mode = #tpu.pipeline_mode<synchronous>, transform_indices = @transform_14, window_bounds = array<i64: 1, 256>}, {pipeline_mode = #tpu.pipeline_mode<synchronous>, transform_indices = @transform_15, window_bounds = array<i64: 256, 512>}, {pipeline_mode = #tpu.pipeline_mode<synchronous>, transform_indices = @transform_16, window_bounds = array<i64: 1, 512>}, {pipeline_mode = #tpu.pipeline_mode<synchronous>, transform_indices = @transform_17, window_bounds = array<i64: 512, 256>}, {pipeline_mode = #tpu.pipeline_mode<synchronous>, transform_indices = @transform_18, window_bounds = array<i64: 1, 256>}, {pipeline_mode = #tpu.pipeline_mode<synchronous>, transform_indices = @transform_19, window_bounds = array<i64: 256, 128>}, {pipeline_mode = #tpu.pipeline_mode<synchronous>, transform_indices = @transform_20, window_bounds = array<i64: 1, 128>}, {pipeline_mode = #tpu.pipeline_mode<synchronous>, transform_indices = @transform_21, window_bounds = array<i64: 128, 64>}, {pipeline_mode = #tpu.pipeline_mode<synchronous>, transform_indices = @transform_22, window_bounds = array<i64: 1, 64>}, {pipeline_mode = #tpu.pipeline_mode<synchronous>, transform_indices = @transform_23, window_bounds = array<i64: 64, 128>}, {pipeline_mode = #tpu.pipeline_mode<synchronous>, transform_indices = @transform_24, window_bounds = array<i64: 1, 128>}, {transform_indices = @transform_25, window_bounds = array<i64: 8, 128>}]} {
    %c0 = arith.constant 0 : index
    %c0_0 = arith.constant 0 : index
    %0 = vector.load %arg1[%c0, %c0_0] : memref<8x6xf32, #tpu.memory_space<vmem>>, vector<8x6xf32>
    %c0_1 = arith.constant 0 : index
    %c0_2 = arith.constant 0 : index
    %1 = vector.load %arg2[%c0_1, %c0_2] : memref<6x48xf32, #tpu.memory_space<vmem>>, vector<6x48xf32>
    %cst = arith.constant dense<0.000000e+00> : vector<8x48xf32>
    %2 = tpu.matmul %0, %1, %cst {dimension_numbers = #tpu.dot_dimension_numbers<[1], [0], [0], [1], [0, 0, 1, 1], [], []>} : vector<8x6xf32>, vector<6x48xf32>, vector<8x48xf32> -> vector<8x48xf32>
    %c0_3 = arith.constant 0 : index
    %c0_4 = arith.constant 0 : index
    %3 = vector.load %arg3[%c0_3, %c0_4] : memref<1x48xf32, #tpu.memory_space<vmem>>, vector<1x48xf32>
    %4 = vector.broadcast %3 : vector<1x48xf32> to vector<8x48xf32>
    %5 = arith.addf %2, %4 : vector<8x48xf32>
    %6 = math.sin %5 : vector<8x48xf32>
    %c0_5 = arith.constant 0 : index
    %c0_6 = arith.constant 0 : index
    %7 = vector.load %arg4[%c0_5, %c0_6] : memref<48x128xbf16, #tpu.memory_space<vmem>>, vector<48x128xbf16>
    %c0_7 = arith.constant 0 : index
    %c0_8 = arith.constant 0 : index
    %8 = vector.load %arg5[%c0_7, %c0_8] : memref<1x128xf32, #tpu.memory_space<vmem>>, vector<1x128xf32>
    %9 = arith.truncf %6 : vector<8x48xf32> to vector<8x48xbf16>
    %cst_9 = arith.constant dense<0.000000e+00> : vector<8x128xf32>
    %10 = tpu.matmul %9, %7, %cst_9 {dimension_numbers = #tpu.dot_dimension_numbers<[1], [0], [0], [1], [0, 0, 1, 1], [], []>} : vector<8x48xbf16>, vector<48x128xbf16>, vector<8x128xf32> -> vector<8x128xf32>
    %11 = vector.broadcast %8 : vector<1x128xf32> to vector<8x128xf32>
    %12 = arith.addf %10, %11 : vector<8x128xf32>
    %c0_10 = arith.constant 0 : index
    %c0_11 = arith.constant 0 : index
    %13 = vector.load %arg6[%c0_10, %c0_11] : memref<128x128xbf16, #tpu.memory_space<vmem>>, vector<128x128xbf16>
    %c0_12 = arith.constant 0 : index
    %c0_13 = arith.constant 0 : index
    %14 = vector.load %arg7[%c0_12, %c0_13] : memref<1x128xf32, #tpu.memory_space<vmem>>, vector<1x128xf32>
    %cst_14 = arith.constant 0.000000e+00 : f32
    %15 = vector.broadcast %cst_14 : f32 to vector<8x128xf32>
    %16 = arith.maximumf %12, %15 : vector<8x128xf32>
    %17 = arith.truncf %16 : vector<8x128xf32> to vector<8x128xbf16>
    %cst_15 = arith.constant dense<0.000000e+00> : vector<8x128xf32>
    %18 = tpu.matmul %17, %13, %cst_15 {dimension_numbers = #tpu.dot_dimension_numbers<[1], [0], [0], [1], [0, 0, 1, 1], [], []>} : vector<8x128xbf16>, vector<128x128xbf16>, vector<8x128xf32> -> vector<8x128xf32>
    %19 = vector.broadcast %14 : vector<1x128xf32> to vector<8x128xf32>
    %20 = arith.addf %18, %19 : vector<8x128xf32>
    %c0_16 = arith.constant 0 : index
    %c0_17 = arith.constant 0 : index
    %21 = vector.load %arg8[%c0_16, %c0_17] : memref<128x128xbf16, #tpu.memory_space<vmem>>, vector<128x128xbf16>
    %c0_18 = arith.constant 0 : index
    %c0_19 = arith.constant 0 : index
    %22 = vector.load %arg9[%c0_18, %c0_19] : memref<1x128xf32, #tpu.memory_space<vmem>>, vector<1x128xf32>
    %cst_20 = arith.constant 0.000000e+00 : f32
    %23 = vector.broadcast %cst_20 : f32 to vector<8x128xf32>
    %24 = arith.maximumf %20, %23 : vector<8x128xf32>
    %25 = arith.truncf %24 : vector<8x128xf32> to vector<8x128xbf16>
    %cst_21 = arith.constant dense<0.000000e+00> : vector<8x128xf32>
    %26 = tpu.matmul %25, %21, %cst_21 {dimension_numbers = #tpu.dot_dimension_numbers<[1], [0], [0], [1], [0, 0, 1, 1], [], []>} : vector<8x128xbf16>, vector<128x128xbf16>, vector<8x128xf32> -> vector<8x128xf32>
    %27 = vector.broadcast %22 : vector<1x128xf32> to vector<8x128xf32>
    %28 = arith.addf %26, %27 : vector<8x128xf32>
    %c0_22 = arith.constant 0 : index
    %c0_23 = arith.constant 0 : index
    %29 = vector.load %arg10[%c0_22, %c0_23] : memref<128x128xbf16, #tpu.memory_space<vmem>>, vector<128x128xbf16>
    %c0_24 = arith.constant 0 : index
    %c0_25 = arith.constant 0 : index
    %30 = vector.load %arg11[%c0_24, %c0_25] : memref<1x128xf32, #tpu.memory_space<vmem>>, vector<1x128xf32>
    %cst_26 = arith.constant 0.000000e+00 : f32
    %31 = vector.broadcast %cst_26 : f32 to vector<8x128xf32>
    %32 = arith.maximumf %28, %31 : vector<8x128xf32>
    %33 = arith.truncf %32 : vector<8x128xf32> to vector<8x128xbf16>
    %cst_27 = arith.constant dense<0.000000e+00> : vector<8x128xf32>
    %34 = tpu.matmul %33, %29, %cst_27 {dimension_numbers = #tpu.dot_dimension_numbers<[1], [0], [0], [1], [0, 0, 1, 1], [], []>} : vector<8x128xbf16>, vector<128x128xbf16>, vector<8x128xf32> -> vector<8x128xf32>
    %35 = vector.broadcast %30 : vector<1x128xf32> to vector<8x128xf32>
    %36 = arith.addf %34, %35 : vector<8x128xf32>
    %c0_28 = arith.constant 0 : index
    %c0_29 = arith.constant 0 : index
    %37 = vector.load %arg12[%c0_28, %c0_29] : memref<128x128xbf16, #tpu.memory_space<vmem>>, vector<128x128xbf16>
    %c0_30 = arith.constant 0 : index
    %c0_31 = arith.constant 0 : index
    %38 = vector.load %arg13[%c0_30, %c0_31] : memref<1x128xf32, #tpu.memory_space<vmem>>, vector<1x128xf32>
    %cst_32 = arith.constant 0.000000e+00 : f32
    %39 = vector.broadcast %cst_32 : f32 to vector<8x128xf32>
    %40 = arith.maximumf %36, %39 : vector<8x128xf32>
    %41 = arith.truncf %40 : vector<8x128xf32> to vector<8x128xbf16>
    %cst_33 = arith.constant dense<0.000000e+00> : vector<8x128xf32>
    %42 = tpu.matmul %41, %37, %cst_33 {dimension_numbers = #tpu.dot_dimension_numbers<[1], [0], [0], [1], [0, 0, 1, 1], [], []>} : vector<8x128xbf16>, vector<128x128xbf16>, vector<8x128xf32> -> vector<8x128xf32>
    %43 = vector.broadcast %38 : vector<1x128xf32> to vector<8x128xf32>
    %44 = arith.addf %42, %43 : vector<8x128xf32>
    %c0_34 = arith.constant 0 : index
    %c0_35 = arith.constant 0 : index
    %45 = vector.load %arg14[%c0_34, %c0_35] : memref<128x256xbf16, #tpu.memory_space<vmem>>, vector<128x256xbf16>
    %c0_36 = arith.constant 0 : index
    %c0_37 = arith.constant 0 : index
    %46 = vector.load %arg15[%c0_36, %c0_37] : memref<1x256xf32, #tpu.memory_space<vmem>>, vector<1x256xf32>
    %cst_38 = arith.constant 0.000000e+00 : f32
    %47 = vector.broadcast %cst_38 : f32 to vector<8x128xf32>
    %48 = arith.maximumf %44, %47 : vector<8x128xf32>
    %49 = arith.truncf %48 : vector<8x128xf32> to vector<8x128xbf16>
    %cst_39 = arith.constant dense<0.000000e+00> : vector<8x256xf32>
    %50 = tpu.matmul %49, %45, %cst_39 {dimension_numbers = #tpu.dot_dimension_numbers<[1], [0], [0], [1], [0, 0, 1, 1], [], []>} : vector<8x128xbf16>, vector<128x256xbf16>, vector<8x256xf32> -> vector<8x256xf32>
    %51 = vector.broadcast %46 : vector<1x256xf32> to vector<8x256xf32>
    %52 = arith.addf %50, %51 : vector<8x256xf32>
    %c0_40 = arith.constant 0 : index
    %c0_41 = arith.constant 0 : index
    %53 = vector.load %arg16[%c0_40, %c0_41] : memref<256x512xbf16, #tpu.memory_space<vmem>>, vector<256x512xbf16>
    %c0_42 = arith.constant 0 : index
    %c0_43 = arith.constant 0 : index
    %54 = vector.load %arg17[%c0_42, %c0_43] : memref<1x512xf32, #tpu.memory_space<vmem>>, vector<1x512xf32>
    %cst_44 = arith.constant 0.000000e+00 : f32
    %55 = vector.broadcast %cst_44 : f32 to vector<8x256xf32>
    %56 = arith.maximumf %52, %55 : vector<8x256xf32>
    %57 = arith.truncf %56 : vector<8x256xf32> to vector<8x256xbf16>
    %cst_45 = arith.constant dense<0.000000e+00> : vector<8x512xf32>
    %58 = tpu.matmul %57, %53, %cst_45 {dimension_numbers = #tpu.dot_dimension_numbers<[1], [0], [0], [1], [0, 0, 1, 1], [], []>} : vector<8x256xbf16>, vector<256x512xbf16>, vector<8x512xf32> -> vector<8x512xf32>
    %59 = vector.broadcast %54 : vector<1x512xf32> to vector<8x512xf32>
    %60 = arith.addf %58, %59 : vector<8x512xf32>
    %c0_46 = arith.constant 0 : index
    %c0_47 = arith.constant 0 : index
    %61 = vector.load %arg18[%c0_46, %c0_47] : memref<512x256xbf16, #tpu.memory_space<vmem>>, vector<512x256xbf16>
    %c0_48 = arith.constant 0 : index
    %c0_49 = arith.constant 0 : index
    %62 = vector.load %arg19[%c0_48, %c0_49] : memref<1x256xf32, #tpu.memory_space<vmem>>, vector<1x256xf32>
    %cst_50 = arith.constant 0.000000e+00 : f32
    %63 = vector.broadcast %cst_50 : f32 to vector<8x512xf32>
    %64 = arith.maximumf %60, %63 : vector<8x512xf32>
    %65 = arith.truncf %64 : vector<8x512xf32> to vector<8x512xbf16>
    %cst_51 = arith.constant dense<0.000000e+00> : vector<8x256xf32>
    %66 = tpu.matmul %65, %61, %cst_51 {dimension_numbers = #tpu.dot_dimension_numbers<[1], [0], [0], [1], [0, 0, 1, 1], [], []>} : vector<8x512xbf16>, vector<512x256xbf16>, vector<8x256xf32> -> vector<8x256xf32>
    %67 = vector.broadcast %62 : vector<1x256xf32> to vector<8x256xf32>
    %68 = arith.addf %66, %67 : vector<8x256xf32>
    %c0_52 = arith.constant 0 : index
    %c0_53 = arith.constant 0 : index
    %69 = vector.load %arg20[%c0_52, %c0_53] : memref<256x128xbf16, #tpu.memory_space<vmem>>, vector<256x128xbf16>
    %c0_54 = arith.constant 0 : index
    %c0_55 = arith.constant 0 : index
    %70 = vector.load %arg21[%c0_54, %c0_55] : memref<1x128xf32, #tpu.memory_space<vmem>>, vector<1x128xf32>
    %cst_56 = arith.constant 0.000000e+00 : f32
    %71 = vector.broadcast %cst_56 : f32 to vector<8x256xf32>
    %72 = arith.maximumf %68, %71 : vector<8x256xf32>
    %73 = arith.truncf %72 : vector<8x256xf32> to vector<8x256xbf16>
    %cst_57 = arith.constant dense<0.000000e+00> : vector<8x128xf32>
    %74 = tpu.matmul %73, %69, %cst_57 {dimension_numbers = #tpu.dot_dimension_numbers<[1], [0], [0], [1], [0, 0, 1, 1], [], []>} : vector<8x256xbf16>, vector<256x128xbf16>, vector<8x128xf32> -> vector<8x128xf32>
    %75 = vector.broadcast %70 : vector<1x128xf32> to vector<8x128xf32>
    %76 = arith.addf %74, %75 : vector<8x128xf32>
    %c0_58 = arith.constant 0 : index
    %c0_59 = arith.constant 0 : index
    %77 = vector.load %arg22[%c0_58, %c0_59] : memref<128x64xbf16, #tpu.memory_space<vmem>>, vector<128x64xbf16>
    %c0_60 = arith.constant 0 : index
    %c0_61 = arith.constant 0 : index
    %78 = vector.load %arg23[%c0_60, %c0_61] : memref<1x64xf32, #tpu.memory_space<vmem>>, vector<1x64xf32>
    %cst_62 = arith.constant 0.000000e+00 : f32
    %79 = vector.broadcast %cst_62 : f32 to vector<8x128xf32>
    %80 = arith.maximumf %76, %79 : vector<8x128xf32>
    %81 = arith.truncf %80 : vector<8x128xf32> to vector<8x128xbf16>
    %cst_63 = arith.constant dense<0.000000e+00> : vector<8x64xf32>
    %82 = tpu.matmul %81, %77, %cst_63 {dimension_numbers = #tpu.dot_dimension_numbers<[1], [0], [0], [1], [0, 0, 1, 1], [], []>} : vector<8x128xbf16>, vector<128x64xbf16>, vector<8x64xf32> -> vector<8x64xf32>
    %83 = vector.broadcast %78 : vector<1x64xf32> to vector<8x64xf32>
    %84 = arith.addf %82, %83 : vector<8x64xf32>
    %c0_64 = arith.constant 0 : index
    %c0_65 = arith.constant 0 : index
    %85 = vector.load %arg24[%c0_64, %c0_65] : memref<64x128xbf16, #tpu.memory_space<vmem>>, vector<64x128xbf16>
    %c0_66 = arith.constant 0 : index
    %c0_67 = arith.constant 0 : index
    %86 = vector.load %arg25[%c0_66, %c0_67] : memref<1x128xf32, #tpu.memory_space<vmem>>, vector<1x128xf32>
    %cst_68 = arith.constant 0.000000e+00 : f32
    %87 = vector.broadcast %cst_68 : f32 to vector<8x64xf32>
    %88 = arith.maximumf %84, %87 : vector<8x64xf32>
    %89 = arith.truncf %88 : vector<8x64xf32> to vector<8x64xbf16>
    %cst_69 = arith.constant dense<0.000000e+00> : vector<8x128xf32>
    %90 = tpu.matmul %89, %85, %cst_69 {dimension_numbers = #tpu.dot_dimension_numbers<[1], [0], [0], [1], [0, 0, 1, 1], [], []>} : vector<8x64xbf16>, vector<64x128xbf16>, vector<8x128xf32> -> vector<8x128xf32>
    %91 = vector.broadcast %86 : vector<1x128xf32> to vector<8x128xf32>
    %92 = arith.addf %90, %91 : vector<8x128xf32>
    %c0_70 = arith.constant 0 : index
    %c0_71 = arith.constant 0 : index
    %93 = vector.load %arg26[%c0_70, %c0_71] : memref<8x128xf32, #tpu.memory_space<vmem>>, vector<8x128xf32>
    tpu.vector_store %arg26[%c0_70, %c0_71], %92 {strides = array<i32>} : memref<8x128xf32, #tpu.memory_space<vmem>>, vector<8x128xf32>,
    return
  }
  func.func @transform_0(%arg0: i32) -> (i32, i32) {
    %c0_i32 = arith.constant 0 : i32
    %c0_i32_0 = arith.constant 0 : i32
    return %arg0, %c0_i32 : i32, i32
  }
  func.func @transform_1(%arg0: i32) -> (i32, i32) {
    %c0_i32 = arith.constant 0 : i32
    %c0_i32_0 = arith.constant 0 : i32
    %c0_i32_1 = arith.constant 0 : i32
    return %c0_i32, %c0_i32_0 : i32, i32
  }
  func.func @transform_2(%arg0: i32) -> (i32, i32) {
    %c0_i32 = arith.constant 0 : i32
    %c0_i32_0 = arith.constant 0 : i32
    %c0_i32_1 = arith.constant 0 : i32
    return %c0_i32, %c0_i32_0 : i32, i32
  }
  func.func @transform_3(%arg0: i32) -> (i32, i32) {
    %c0_i32 = arith.constant 0 : i32
    %c0_i32_0 = arith.constant 0 : i32
    %c0_i32_1 = arith.constant 0 : i32
    return %c0_i32, %c0_i32_0 : i32, i32
  }
  func.func @transform_4(%arg0: i32) -> (i32, i32) {
    %c0_i32 = arith.constant 0 : i32
    %c0_i32_0 = arith.constant 0 : i32
    %c0_i32_1 = arith.constant 0 : i32
    return %c0_i32, %c0_i32_0 : i32, i32
  }
  func.func @transform_5(%arg0: i32) -> (i32, i32) {
    %c0_i32 = arith.constant 0 : i32
    %c0_i32_0 = arith.constant 0 : i32
    %c0_i32_1 = arith.constant 0 : i32
    return %c0_i32, %c0_i32_0 : i32, i32
  }
  func.func @transform_6(%arg0: i32) -> (i32, i32) {
    %c0_i32 = arith.constant 0 : i32
    %c0_i32_0 = arith.constant 0 : i32
    %c0_i32_1 = arith.constant 0 : i32
    return %c0_i32, %c0_i32_0 : i32, i32
  }
  func.func @transform_7(%arg0: i32) -> (i32, i32) {
    %c0_i32 = arith.constant 0 : i32
    %c0_i32_0 = arith.constant 0 : i32
    %c0_i32_1 = arith.constant 0 : i32
    return %c0_i32, %c0_i32_0 : i32, i32
  }
  func.func @transform_8(%arg0: i32) -> (i32, i32) {
    %c0_i32 = arith.constant 0 : i32
    %c0_i32_0 = arith.constant 0 : i32
    %c0_i32_1 = arith.constant 0 : i32
    return %c0_i32, %c0_i32_0 : i32, i32
  }
  func.func @transform_9(%arg0: i32) -> (i32, i32) {
    %c0_i32 = arith.constant 0 : i32
    %c0_i32_0 = arith.constant 0 : i32
    %c0_i32_1 = arith.constant 0 : i32
    return %c0_i32, %c0_i32_0 : i32, i32
  }
  func.func @transform_10(%arg0: i32) -> (i32, i32) {
    %c0_i32 = arith.constant 0 : i32
    %c0_i32_0 = arith.constant 0 : i32
    %c0_i32_1 = arith.constant 0 : i32
    return %c0_i32, %c0_i32_0 : i32, i32
  }
  func.func @transform_11(%arg0: i32) -> (i32, i32) {
    %c0_i32 = arith.constant 0 : i32
    %c0_i32_0 = arith.constant 0 : i32
    %c0_i32_1 = arith.constant 0 : i32
    return %c0_i32, %c0_i32_0 : i32, i32
  }
  func.func @transform_12(%arg0: i32) -> (i32, i32) {
    %c0_i32 = arith.constant 0 : i32
    %c0_i32_0 = arith.constant 0 : i32
    %c0_i32_1 = arith.constant 0 : i32
    return %c0_i32, %c0_i32_0 : i32, i32
  }
  func.func @transform_13(%arg0: i32) -> (i32, i32) {
    %c0_i32 = arith.constant 0 : i32
    %c0_i32_0 = arith.constant 0 : i32
    %c0_i32_1 = arith.constant 0 : i32
    return %c0_i32, %c0_i32_0 : i32, i32
  }
  func.func @transform_14(%arg0: i32) -> (i32, i32) {
    %c0_i32 = arith.constant 0 : i32
    %c0_i32_0 = arith.constant 0 : i32
    %c0_i32_1 = arith.constant 0 : i32
    return %c0_i32, %c0_i32_0 : i32, i32
  }
  func.func @transform_15(%arg0: i32) -> (i32, i32) {
    %c0_i32 = arith.constant 0 : i32
    %c0_i32_0 = arith.constant 0 : i32
    %c0_i32_1 = arith.constant 0 : i32
    return %c0_i32, %c0_i32_0 : i32, i32
  }
  func.func @transform_16(%arg0: i32) -> (i32, i32) {
    %c0_i32 = arith.constant 0 : i32
    %c0_i32_0 = arith.constant 0 : i32
    %c0_i32_1 = arith.constant 0 : i32
    return %c0_i32, %c0_i32_0 : i32, i32
  }
  func.func @transform_17(%arg0: i32) -> (i32, i32) {
    %c0_i32 = arith.constant 0 : i32
    %c0_i32_0 = arith.constant 0 : i32
    %c0_i32_1 = arith.constant 0 : i32
    return %c0_i32, %c0_i32_0 : i32, i32
  }
  func.func @transform_18(%arg0: i32) -> (i32, i32) {
    %c0_i32 = arith.constant 0 : i32
    %c0_i32_0 = arith.constant 0 : i32
    %c0_i32_1 = arith.constant 0 : i32
    return %c0_i32, %c0_i32_0 : i32, i32
  }
  func.func @transform_19(%arg0: i32) -> (i32, i32) {
    %c0_i32 = arith.constant 0 : i32
    %c0_i32_0 = arith.constant 0 : i32
    %c0_i32_1 = arith.constant 0 : i32
    return %c0_i32, %c0_i32_0 : i32, i32
  }
  func.func @transform_20(%arg0: i32) -> (i32, i32) {
    %c0_i32 = arith.constant 0 : i32
    %c0_i32_0 = arith.constant 0 : i32
    %c0_i32_1 = arith.constant 0 : i32
    return %c0_i32, %c0_i32_0 : i32, i32
  }
  func.func @transform_21(%arg0: i32) -> (i32, i32) {
    %c0_i32 = arith.constant 0 : i32
    %c0_i32_0 = arith.constant 0 : i32
    %c0_i32_1 = arith.constant 0 : i32
    return %c0_i32, %c0_i32_0 : i32, i32
  }
  func.func @transform_22(%arg0: i32) -> (i32, i32) {
    %c0_i32 = arith.constant 0 : i32
    %c0_i32_0 = arith.constant 0 : i32
    %c0_i32_1 = arith.constant 0 : i32
    return %c0_i32, %c0_i32_0 : i32, i32
  }
  func.func @transform_23(%arg0: i32) -> (i32, i32) {
    %c0_i32 = arith.constant 0 : i32
    %c0_i32_0 = arith.constant 0 : i32
    %c0_i32_1 = arith.constant 0 : i32
    return %c0_i32, %c0_i32_0 : i32, i32
  }
  func.func @transform_24(%arg0: i32) -> (i32, i32) {
    %c0_i32 = arith.constant 0 : i32
    %c0_i32_0 = arith.constant 0 : i32
    %c0_i32_1 = arith.constant 0 : i32
    return %c0_i32, %c0_i32_0 : i32, i32
  }
  func.func @transform_25(%arg0: i32) -> (i32, i32) {
    %c0_i32 = arith.constant 0 : i32
    %c0_i32_0 = arith.constant 0 : i32
    return %arg0, %c0_i32 : i32, i32
  }
}

</mosaic_0001>

<llo_original>
// kernel: tpu_custom_call.1
$region0: #{tpu_custom_call.1}
  #allocation0 [shape = 'u32[]', space=smem, size = 0x4, offset = 0x4, fixed_abs, tag = 'smem constant byte address 0x4 - core index']
  #allocation1 [shape = 'u32[144,128]{1,0:T(1,128)}', space=vmem, size = 0x12000, scoped, tag = 'internal scratch']
  %s0 = inlined_call_operand.hbm [shape: f32[8,6], index: 0, kind: input, shape index: {}]
  %s1 = inlined_call_operand.hbm [shape: f32[6,48], index: 1, kind: input, shape index: {}]
  %s2 = inlined_call_operand.hbm [shape: f32[1,48], index: 2, kind: input, shape index: {}]
  %s3 = inlined_call_operand.hbm [shape: bf16[48,128], index: 3, kind: input, shape index: {}]
  %s4 = inlined_call_operand.hbm [shape: f32[1,128], index: 4, kind: input, shape index: {}]
  %s5 = inlined_call_operand.hbm [shape: bf16[128,128], index: 5, kind: input, shape index: {}]
  %s6 = inlined_call_operand.hbm [shape: f32[1,128], index: 6, kind: input, shape index: {}]
  %s7 = inlined_call_operand.hbm [shape: bf16[128,128], index: 7, kind: input, shape index: {}]
  %s8 = inlined_call_operand.hbm [shape: f32[1,128], index: 8, kind: input, shape index: {}]
  %s9 = inlined_call_operand.hbm [shape: bf16[128,128], index: 9, kind: input, shape index: {}]
  %s10 = inlined_call_operand.hbm [shape: f32[1,128], index: 10, kind: input, shape index: {}]
  %s11 = inlined_call_operand.hbm [shape: bf16[128,128], index: 11, kind: input, shape index: {}]
  %s12 = inlined_call_operand.hbm [shape: f32[1,128], index: 12, kind: input, shape index: {}]
  %s13 = inlined_call_operand.vmem [shape: bf16[128,256], index: 13, kind: input, shape index: {}]
  %s14 = inlined_call_operand.hbm [shape: f32[1,256], index: 14, kind: input, shape index: {}]
  %s15 = inlined_call_operand.hbm [shape: bf16[256,512], index: 15, kind: input, shape index: {}]
  %s16 = inlined_call_operand.hbm [shape: f32[1,512], index: 16, kind: input, shape index: {}]
  %s17 = inlined_call_operand.hbm [shape: bf16[512,256], index: 17, kind: input, shape index: {}]
  %s18 = inlined_call_operand.vmem [shape: f32[1,256], index: 18, kind: input, shape index: {}]
  %s19 = inlined_call_operand.hbm [shape: bf16[256,128], index: 19, kind: input, shape index: {}]
  %s20 = inlined_call_operand.vmem [shape: f32[1,128], index: 20, kind: input, shape index: {}]
  %s21 = inlined_call_operand.vmem [shape: bf16[128,64], index: 21, kind: input, shape index: {}]
  %s22 = inlined_call_operand.vmem [shape: f32[1,64], index: 22, kind: input, shape index: {}]
  %s23 = inlined_call_operand.hbm [shape: bf16[64,128], index: 23, kind: input, shape index: {}]
  %s24 = inlined_call_operand.vmem [shape: f32[1,128], index: 24, kind: input, shape index: {}]
  %s25 = inlined_call_operand.hbm [shape: f32[8,128], index: 25, kind: output, shape index: {}]
  %s26 = sld [smem:[#allocation0]]
  $region186: #{tpu_custom_call.1} parent=0
    _
  %s28 = ssub.s32 1, %s26
  %s29 = scalar_select 0, %s28, %s26
  $region1: #{tpu_custom_call.1} parent=0
    #allocation2 [shape = 'u8[4096]{0}', space=vmem, size = 0x1000, scoped, tag = 'input window, operand 0, single buffered']
    #allocation3 [shape = 's32[1]{0}', space=sflag, size = 0x4, scoped, tag = 'scoped memory for tpu_custom_call.1']
    #allocation4 [shape = 's32[1]{0}', space=sflag, size = 0x4, scoped, tag = 'scoped memory for tpu_custom_call.1']
    #allocation5 [shape = 'u8[4096]{0}', space=vmem, size = 0x1000, scoped, tag = 'input window, operand 1, single buffered']
    #allocation6 [shape = 's32[1]{0}', space=sflag, size = 0x4, scoped, tag = 'scoped memory for tpu_custom_call.1']
    #allocation7 [shape = 'u8[512]{0}', space=vmem, size = 0x400, scoped, tag = 'input window, operand 2, single buffered']
    #allocation8 [shape = 'u8[12288]{0}', space=vmem, size = 0x3000, scoped, tag = 'input window, operand 3, single buffered']
    #allocation9 [shape = 's32[1]{0}', space=sflag, size = 0x4, scoped, tag = 'scoped memory for tpu_custom_call.1']
    #allocation10 [shape = 'u8[512]{0}', space=vmem, size = 0x400, scoped, tag = 'input window, operand 4, single buffered']
    #allocation11 [shape = 'u8[32768]{0}', space=vmem, size = 0x8000, scoped, tag = 'input window, operand 5, single buffered']
    #allocation12 [shape = 's32[1]{0}', space=sflag, size = 0x4, scoped, tag = 'scoped memory for tpu_custom_call.1']
    #allocation13 [shape = 'u8[512]{0}', space=vmem, size = 0x400, scoped, tag = 'input window, operand 6, single buffered']
    #allocation14 [shape = 'u8[32768]{0}', space=vmem, size = 0x8000, scoped, tag = 'input window, operand 7, single buffered']
    #allocation15 [shape = 's32[1]{0}', space=sflag, size = 0x4, scoped, tag = 'scoped memory for tpu_custom_call.1']
    #allocation16 [shape = 'u8[512]{0}', space=vmem, size = 0x400, scoped, tag = 'input window, operand 8, single buffered']
    #allocation17 [shape = 'u8[32768]{0}', space=vmem, size = 0x8000, scoped, tag = 'input window, operand 9, single buffered']
    #allocation18 [shape = 's32[1]{0}', space=sflag, size = 0x4, scoped, tag = 'scoped memory for tpu_custom_call.1']
    #allocation19 [shape = 'u8[512]{0}', space=vmem, size = 0x400, scoped, tag = 'input window, operand 10, single buffered']
    #allocation20 [shape = 'u8[32768]{0}', space=vmem, size = 0x8000, scoped, tag = 'input window, operand 11, single buffered']
    #allocation21 [shape = 's32[1]{0}', space=sflag, size = 0x4, scoped, tag = 'scoped memory for tpu_custom_call.1']
    #allocation22 [shape = 'u8[512]{0}', space=vmem, size = 0x400, scoped, tag = 'input window, operand 12, single buffered']
    #allocation23 [shape = 'u8[1024]{0}', space=vmem, size = 0x400, scoped, tag = 'input window, operand 14, single buffered']
    #allocation24 [shape = 's32[1]{0}', space=sflag, size = 0x4, scoped, tag = 'scoped memory for tpu_custom_call.1']
    #allocation25 [shape = 'u8[262144]{0}', space=vmem, size = 0x40000, scoped, tag = 'input window, operand 15, single buffered']
    #allocation26 [shape = 'u8[2048]{0}', space=vmem, size = 0x800, scoped, tag = 'input window, operand 16, single buffered']
    #allocation27 [shape = 's32[1]{0}', space=sflag, size = 0x4, scoped, tag = 'scoped memory for tpu_custom_call.1']
    #allocation28 [shape = 'u8[262144]{0}', space=vmem, size = 0x40000, scoped, tag = 'input window, operand 17, single buffered']
    #allocation29 [shape = 'u8[65536]{0}', space=vmem, size = 0x10000, scoped, tag = 'input window, operand 19, single buffered']
    #allocation30 [shape = 's32[1]{0}', space=sflag, size = 0x4, scoped, tag = 'scoped memory for tpu_custom_call.1']
    #allocation31 [shape = 'u8[16384]{0}', space=vmem, size = 0x4000, scoped, tag = 'input window, operand 23, single buffered']
    #allocation32 [shape = 'u8[4096]{0}', space=vmem, size = 0x1000, scoped, tag = 'output window, operand 0, single buffered']
    %30 = vsyncpa [#allocation3], 0
    %31 = vsyncpa [#allocation6], 0
    %32 = vsyncpa [#allocation9], 0
    %33 = vsyncpa [#allocation12], 0
    %34 = vsyncpa [#allocation15], 0
    %35 = vsyncpa [#allocation18], 0
    %36 = vsyncpa [#allocation21], 0
    %37 = vsyncpa [#allocation24], 0
    %38 = vsyncpa [#allocation27], 0
    %39 = vsyncpa [#allocation30], 0
    %40 = vsyncpa [#allocation4], 0
    // Predicated region
    $region2: #{tpu_custom_call.1} parent=1 // pred_check
      _
    $region3: #{tpu_custom_call.1} parent=1 // pred_check_branch
      %42 = sbr.rel (0) target = $region5
    $region4: #{tpu_custom_call.1} parent=1 // pred_region
      %s44 = ssub.s32 128, 128
      %45 = vsyncadd [#allocation3], %s44
      %s47 = sshll.u32 [#allocation2], 4
      %s48 = int_to_ptr.vmem [resolvable:$true] %s47
      %50 = dma.hbm_to_vmem [thread:$0]  %s0, 128, %s48, [#allocation3]
    $region5: #{tpu_custom_call.1} parent=1 // pred_fallthru
      _
    // Predicated region
    $region6: #{tpu_custom_call.1} parent=1 // pred_check
      _
    $region7: #{tpu_custom_call.1} parent=1 // pred_check_branch
      %52 = sbr.rel (0) target = $region9
    $region8: #{tpu_custom_call.1} parent=1 // pred_region
      %s54 = ssub.s32 128, 128
      %55 = vsyncadd [#allocation6], %s54
      %s57 = sshll.u32 [#allocation5], 4
      %s58 = int_to_ptr.vmem [resolvable:$true] %s57
      %60 = dma.hbm_to_vmem [thread:$0]  %s1, 128, %s58, [#allocation6]
    $region9: #{tpu_custom_call.1} parent=1 // pred_fallthru
      _
    // Predicated region
    $region10: #{tpu_custom_call.1} parent=1 // pred_check
      _
    $region11: #{tpu_custom_call.1} parent=1 // pred_check_branch
      %62 = sbr.rel (0) target = $region13
    $region12: #{tpu_custom_call.1} parent=1 // pred_region
      %s64 = ssub.s32 16, 16
      %65 = vsyncadd [#allocation6], %s64
      %s67 = sshll.u32 [#allocation7], 4
      %s68 = int_to_ptr.vmem [resolvable:$true] %s67
      %70 = dma.hbm_to_vmem [thread:$0]  %s2, 16, %s68, [#allocation6]
    $region13: #{tpu_custom_call.1} parent=1 // pred_fallthru
      _
    // Predicated region
    $region14: #{tpu_custom_call.1} parent=1 // pred_check
      _
    $region15: #{tpu_custom_call.1} parent=1 // pred_check_branch
      %72 = sbr.rel (0) target = $region17
    $region16: #{tpu_custom_call.1} parent=1 // pred_region
      %s74 = ssub.s32 384, 384
      %75 = vsyncadd [#allocation9], %s74
      %s76 = sshll.u32 [#allocation8], 4
      %s77 = int_to_ptr.vmem [resolvable:$true] %s76
      %82 = dma.hbm_to_vmem [thread:$0]  %s3, 384, %s77, [#allocation9], 64, 64, 4
    $region17: #{tpu_custom_call.1} parent=1 // pred_fallthru
      _
    // Predicated region
    $region18: #{tpu_custom_call.1} parent=1 // pred_check
      _
    $region19: #{tpu_custom_call.1} parent=1 // pred_check_branch
      %84 = sbr.rel (0) target = $region21
    $region20: #{tpu_custom_call.1} parent=1 // pred_region
      %s86 = ssub.s32 16, 16
      %87 = vsyncadd [#allocation9], %s86
      %s89 = sshll.u32 [#allocation10], 4
      %s90 = int_to_ptr.vmem [resolvable:$true] %s89
      %92 = dma.hbm_to_vmem [thread:$0]  %s4, 16, %s90, [#allocation9]
    $region21: #{tpu_custom_call.1} parent=1 // pred_fallthru
      _
    // Predicated region
    $region22: #{tpu_custom_call.1} parent=1 // pred_check
      _
    $region23: #{tpu_custom_call.1} parent=1 // pred_check_branch
      %94 = sbr.rel (0) target = $region25
    $region24: #{tpu_custom_call.1} parent=1 // pred_region
      %s96 = ssub.s32 1024, 1024
      %97 = vsyncadd [#allocation12], %s96
      %s98 = sshll.u32 [#allocation11], 4
      %s99 = int_to_ptr.vmem [resolvable:$true] %s98
      %104 = dma.hbm_to_vmem [thread:$0]  %s5, 1024, %s99, [#allocation12], 64, 64, 4
    $region25: #{tpu_custom_call.1} parent=1 // pred_fallthru
      _
    // Predicated region
    $region26: #{tpu_custom_call.1} parent=1 // pred_check
      _
    $region27: #{tpu_custom_call.1} parent=1 // pred_check_branch
      %106 = sbr.rel (0) target = $region29
    $region28: #{tpu_custom_call.1} parent=1 // pred_region
      %s108 = ssub.s32 16, 16
      %109 = vsyncadd [#allocation12], %s108
      %s111 = sshll.u32 [#allocation13], 4
      %s112 = int_to_ptr.vmem [resolvable:$true] %s111
      %114 = dma.hbm_to_vmem [thread:$0]  %s6, 16, %s112, [#allocation12]
    $region29: #{tpu_custom_call.1} parent=1 // pred_fallthru
      _
    // Predicated region
    $region30: #{tpu_custom_call.1} parent=1 // pred_check
      _
    $region31: #{tpu_custom_call.1} parent=1 // pred_check_branch
      %116 = sbr.rel (0) target = $region33
    $region32: #{tpu_custom_call.1} parent=1 // pred_region
      %s118 = ssub.s32 1024, 1024
      %119 = vsyncadd [#allocation15], %s118
      %s120 = sshll.u32 [#allocation14], 4
      %s121 = int_to_ptr.vmem [resolvable:$true] %s120
      %126 = dma.hbm_to_vmem [thread:$0]  %s7, 1024, %s121, [#allocation15], 64, 64, 4
    $region33: #{tpu_custom_call.1} parent=1 // pred_fallthru
      _
    // Predicated region
    $region34: #{tpu_custom_call.1} parent=1 // pred_check
      _
    $region35: #{tpu_custom_call.1} parent=1 // pred_check_branch
      %128 = sbr.rel (0) target = $region37
    $region36: #{tpu_custom_call.1} parent=1 // pred_region
      %s130 = ssub.s32 16, 16
      %131 = vsyncadd [#allocation15], %s130
      %s133 = sshll.u32 [#allocation16], 4
      %s134 = int_to_ptr.vmem [resolvable:$true] %s133
      %136 = dma.hbm_to_vmem [thread:$0]  %s8, 16, %s134, [#allocation15]
    $region37: #{tpu_custom_call.1} parent=1 // pred_fallthru
      _
    // Predicated region
    $region38: #{tpu_custom_call.1} parent=1 // pred_check
      _
    $region39: #{tpu_custom_call.1} parent=1 // pred_check_branch
      %138 = sbr.rel (0) target = $region41
    $region40: #{tpu_custom_call.1} parent=1 // pred_region
      %s140 = ssub.s32 1024, 1024
      %141 = vsyncadd [#allocation18], %s140
      %s142 = sshll.u32 [#allocation17], 4
      %s143 = int_to_ptr.vmem [resolvable:$true] %s142
      %148 = dma.hbm_to_vmem [thread:$0]  %s9, 1024, %s143, [#allocation18], 64, 64, 4
    $region41: #{tpu_custom_call.1} parent=1 // pred_fallthru
      _
    // Predicated region
    $region42: #{tpu_custom_call.1} parent=1 // pred_check
      _
    $region43: #{tpu_custom_call.1} parent=1 // pred_check_branch
      %150 = sbr.rel (0) target = $region45
    $region44: #{tpu_custom_call.1} parent=1 // pred_region
      %s152 = ssub.s32 16, 16
      %153 = vsyncadd [#allocation18], %s152
      %s155 = sshll.u32 [#allocation19], 4
      %s156 = int_to_ptr.vmem [resolvable:$true] %s155
      %158 = dma.hbm_to_vmem [thread:$0]  %s10, 16, %s156, [#allocation18]
    $region45: #{tpu_custom_call.1} parent=1 // pred_fallthru
      _
    // Predicated region
    $region46: #{tpu_custom_call.1} parent=1 // pred_check
      _
    $region47: #{tpu_custom_call.1} parent=1 // pred_check_branch
      %160 = sbr.rel (0) target = $region49
    $region48: #{tpu_custom_call.1} parent=1 // pred_region
      %s162 = ssub.s32 1024, 1024
      %163 = vsyncadd [#allocation21], %s162
      %s164 = sshll.u32 [#allocation20], 4
      %s165 = int_to_ptr.vmem [resolvable:$true] %s164
      %170 = dma.hbm_to_vmem [thread:$0]  %s11, 1024, %s165, [#allocation21], 64, 64, 4
    $region49: #{tpu_custom_call.1} parent=1 // pred_fallthru
      _
    // Predicated region
    $region50: #{tpu_custom_call.1} parent=1 // pred_check
      _
    $region51: #{tpu_custom_call.1} parent=1 // pred_check_branch
      %172 = sbr.rel (0) target = $region53
    $region52: #{tpu_custom_call.1} parent=1 // pred_region
      %s174 = ssub.s32 16, 16
      %175 = vsyncadd [#allocation21], %s174
      %s177 = sshll.u32 [#allocation22], 4
      %s178 = int_to_ptr.vmem [resolvable:$true] %s177
      %180 = dma.hbm_to_vmem [thread:$0]  %s12, 16, %s178, [#allocation21]
    $region53: #{tpu_custom_call.1} parent=1 // pred_fallthru
      _
    // Predicated region
    $region54: #{tpu_custom_call.1} parent=1 // pred_check
      _
    $region55: #{tpu_custom_call.1} parent=1 // pred_check_branch
      %182 = sbr.rel (0) target = $region57
    $region56: #{tpu_custom_call.1} parent=1 // pred_region
      _
    $region57: #{tpu_custom_call.1} parent=1 // pred_fallthru
      _
    // Predicated region
    $region58: #{tpu_custom_call.1} parent=1 // pred_check
      _
    $region59: #{tpu_custom_call.1} parent=1 // pred_check_branch
      %184 = sbr.rel (0) target = $region61
    $region60: #{tpu_custom_call.1} parent=1 // pred_region
      %s186 = ssub.s32 32, 32
      %187 = vsyncadd [#allocation24], %s186
      %s189 = sshll.u32 [#allocation23], 4
      %s190 = int_to_ptr.vmem [resolvable:$true] %s189
      %192 = dma.hbm_to_vmem [thread:$0]  %s14, 32, %s190, [#allocation24]
    $region61: #{tpu_custom_call.1} parent=1 // pred_fallthru
      _
    // Predicated region
    $region62: #{tpu_custom_call.1} parent=1 // pred_check
      _
    $region63: #{tpu_custom_call.1} parent=1 // pred_check_branch
      %194 = sbr.rel (0) target = $region65
    $region64: #{tpu_custom_call.1} parent=1 // pred_region
      %s196 = ssub.s32 8192, 8192
      %197 = vsyncadd [#allocation24], %s196
      %s198 = sshll.u32 [#allocation25], 4
      %s199 = int_to_ptr.vmem [resolvable:$true] %s198
      %204 = dma.hbm_to_vmem [thread:$0]  %s15, 8192, %s199, [#allocation24], 256, 256, 16
    $region65: #{tpu_custom_call.1} parent=1 // pred_fallthru
      _
    // Predicated region
    $region66: #{tpu_custom_call.1} parent=1 // pred_check
      _
    $region67: #{tpu_custom_call.1} parent=1 // pred_check_branch
      %206 = sbr.rel (0) target = $region69
    $region68: #{tpu_custom_call.1} parent=1 // pred_region
      %s208 = ssub.s32 64, 64
      %209 = vsyncadd [#allocation27], %s208
      %s211 = sshll.u32 [#allocation26], 4
      %s212 = int_to_ptr.vmem [resolvable:$true] %s211
      %214 = dma.hbm_to_vmem [thread:$0]  %s16, 64, %s212, [#allocation27]
    $region69: #{tpu_custom_call.1} parent=1 // pred_fallthru
      _
    // Predicated region
    $region70: #{tpu_custom_call.1} parent=1 // pred_check
      _
    $region71: #{tpu_custom_call.1} parent=1 // pred_check_branch
      %216 = sbr.rel (0) target = $region73
    $region72: #{tpu_custom_call.1} parent=1 // pred_region
      %s218 = ssub.s32 8192, 8192
      %219 = vsyncadd [#allocation27], %s218
      %s220 = sshll.u32 [#allocation28], 4
      %s221 = int_to_ptr.vmem [resolvable:$true] %s220
      %226 = dma.hbm_to_vmem [thread:$0]  %s17, 8192, %s221, [#allocation27], 128, 128, 8
    $region73: #{tpu_custom_call.1} parent=1 // pred_fallthru
      _
    // Predicated region
    $region74: #{tpu_custom_call.1} parent=1 // pred_check
      _
    $region75: #{tpu_custom_call.1} parent=1 // pred_check_branch
      %228 = sbr.rel (0) target = $region77
    $region76: #{tpu_custom_call.1} parent=1 // pred_region
      _
    $region77: #{tpu_custom_call.1} parent=1 // pred_fallthru
      _
    // Predicated region
    $region78: #{tpu_custom_call.1} parent=1 // pred_check
      _
    $region79: #{tpu_custom_call.1} parent=1 // pred_check_branch
      %230 = sbr.rel (0) target = $region81
    $region80: #{tpu_custom_call.1} parent=1 // pred_region
      %s232 = ssub.s32 2048, 2048
      %233 = vsyncadd [#allocation30], %s232
      %s234 = sshll.u32 [#allocation29], 4
      %s235 = int_to_ptr.vmem [resolvable:$true] %s234
      %240 = dma.hbm_to_vmem [thread:$0]  %s19, 2048, %s235, [#allocation30], 64, 64, 4
    $region81: #{tpu_custom_call.1} parent=1 // pred_fallthru
      _
    // Predicated region
    $region82: #{tpu_custom_call.1} parent=1 // pred_check
      _
    $region83: #{tpu_custom_call.1} parent=1 // pred_check_branch
      %242 = sbr.rel (0) target = $region85
    $region84: #{tpu_custom_call.1} parent=1 // pred_region
      _
    $region85: #{tpu_custom_call.1} parent=1 // pred_fallthru
      _
    // Predicated region
    $region86: #{tpu_custom_call.1} parent=1 // pred_check
      _
    $region87: #{tpu_custom_call.1} parent=1 // pred_check_branch
      %244 = sbr.rel (0) target = $region89
    $region88: #{tpu_custom_call.1} parent=1 // pred_region
      _
    $region89: #{tpu_custom_call.1} parent=1 // pred_fallthru
      _
    // Predicated region
    $region90: #{tpu_custom_call.1} parent=1 // pred_check
      _
    $region91: #{tpu_custom_call.1} parent=1 // pred_check_branch
      %246 = sbr.rel (0) target = $region93
    $region92: #{tpu_custom_call.1} parent=1 // pred_region
      _
    $region93: #{tpu_custom_call.1} parent=1 // pred_fallthru
      _
    // Predicated region
    $region94: #{tpu_custom_call.1} parent=1 // pred_check
      _
    $region95: #{tpu_custom_call.1} parent=1 // pred_check_branch
      %248 = sbr.rel (0) target = $region97
    $region96: #{tpu_custom_call.1} parent=1 // pred_region
      %s250 = ssub.s32 512, 512
      %251 = vsyncadd [#allocation30], %s250
      %s252 = sshll.u32 [#allocation31], 4
      %s253 = int_to_ptr.vmem [resolvable:$true] %s252
      %258 = dma.hbm_to_vmem [thread:$0]  %s23, 512, %s253, [#allocation30], 64, 64, 4
    $region97: #{tpu_custom_call.1} parent=1 // pred_fallthru
      _
    // Predicated region
    $region98: #{tpu_custom_call.1} parent=1 // pred_check
      _
    $region99: #{tpu_custom_call.1} parent=1 // pred_check_branch
      %260 = sbr.rel (0) target = $region101
    $region100: #{tpu_custom_call.1} parent=1 // pred_region
      _
    $region101: #{tpu_custom_call.1} parent=1 // pred_fallthru
      _
    // Predicated region
    $region102: #{tpu_custom_call.1} parent=1 // pred_check
      _
    $region103: #{tpu_custom_call.1} parent=1 // pred_check_branch
      %262 = sbr.rel (0) target = $region105
    $region104: #{tpu_custom_call.1} parent=1 // pred_region
      %263 = dma.done [#allocation3], 128
    $region105: #{tpu_custom_call.1} parent=1 // pred_fallthru
      _
    // Predicated region
    $region106: #{tpu_custom_call.1} parent=1 // pred_check
      _
    $region107: #{tpu_custom_call.1} parent=1 // pred_check_branch
      %265 = sbr.rel (0) target = $region109
    $region108: #{tpu_custom_call.1} parent=1 // pred_region
      %266 = dma.done [#allocation6], 128
    $region109: #{tpu_custom_call.1} parent=1 // pred_fallthru
      _
    // Predicated region
    $region110: #{tpu_custom_call.1} parent=1 // pred_check
      _
    $region111: #{tpu_custom_call.1} parent=1 // pred_check_branch
      %268 = sbr.rel (0) target = $region113
    $region112: #{tpu_custom_call.1} parent=1 // pred_region
      %269 = dma.done [#allocation6], 16
    $region113: #{tpu_custom_call.1} parent=1 // pred_fallthru
      _
    // Predicated region
    $region114: #{tpu_custom_call.1} parent=1 // pred_check
      _
    $region115: #{tpu_custom_call.1} parent=1 // pred_check_branch
      %271 = sbr.rel (0) target = $region117
    $region116: #{tpu_custom_call.1} parent=1 // pred_region
      %272 = dma.done [#allocation9], 384
    $region117: #{tpu_custom_call.1} parent=1 // pred_fallthru
      _
    // Predicated region
    $region118: #{tpu_custom_call.1} parent=1 // pred_check
      _
    $region119: #{tpu_custom_call.1} parent=1 // pred_check_branch
      %274 = sbr.rel (0) target = $region121
    $region120: #{tpu_custom_call.1} parent=1 // pred_region
      %275 = dma.done [#allocation9], 16
    $region121: #{tpu_custom_call.1} parent=1 // pred_fallthru
      _
    // Predicated region
    $region122: #{tpu_custom_call.1} parent=1 // pred_check
      _
    $region123: #{tpu_custom_call.1} parent=1 // pred_check_branch
      %277 = sbr.rel (0) target = $region125
    $region124: #{tpu_custom_call.1} parent=1 // pred_region
      %278 = dma.done [#allocation12], 1024
    $region125: #{tpu_custom_call.1} parent=1 // pred_fallthru
      _
    // Predicated region
    $region126: #{tpu_custom_call.1} parent=1 // pred_check
      _
    $region127: #{tpu_custom_call.1} parent=1 // pred_check_branch
      %280 = sbr.rel (0) target = $region129
    $region128: #{tpu_custom_call.1} parent=1 // pred_region
      %281 = dma.done [#allocation12], 16
    $region129: #{tpu_custom_call.1} parent=1 // pred_fallthru
      _
    // Predicated region
    $region130: #{tpu_custom_call.1} parent=1 // pred_check
      _
    $region131: #{tpu_custom_call.1} parent=1 // pred_check_branch
      %283 = sbr.rel (0) target = $region133
    $region132: #{tpu_custom_call.1} parent=1 // pred_region
      %284 = dma.done [#allocation15], 1024
    $region133: #{tpu_custom_call.1} parent=1 // pred_fallthru
      _
    // Predicated region
    $region134: #{tpu_custom_call.1} parent=1 // pred_check
      _
    $region135: #{tpu_custom_call.1} parent=1 // pred_check_branch
      %286 = sbr.rel (0) target = $region137
    $region136: #{tpu_custom_call.1} parent=1 // pred_region
      %287 = dma.done [#allocation15], 16
    $region137: #{tpu_custom_call.1} parent=1 // pred_fallthru
      _
    // Predicated region
    $region138: #{tpu_custom_call.1} parent=1 // pred_check
      _
    $region139: #{tpu_custom_call.1} parent=1 // pred_check_branch
      %289 = sbr.rel (0) target = $region141
    $region140: #{tpu_custom_call.1} parent=1 // pred_region
      %290 = dma.done [#allocation18], 1024
    $region141: #{tpu_custom_call.1} parent=1 // pred_fallthru
      _
    // Predicated region
    $region142: #{tpu_custom_call.1} parent=1 // pred_check
      _
    $region143: #{tpu_custom_call.1} parent=1 // pred_check_branch
      %292 = sbr.rel (0) target = $region145
    $region144: #{tpu_custom_call.1} parent=1 // pred_region
      %293 = dma.done [#allocation18], 16
    $region145: #{tpu_custom_call.1} parent=1 // pred_fallthru
      _
    // Predicated region
    $region146: #{tpu_custom_call.1} parent=1 // pred_check
      _
    $region147: #{tpu_custom_call.1} parent=1 // pred_check_branch
      %295 = sbr.rel (0) target = $region149
    $region148: #{tpu_custom_call.1} parent=1 // pred_region
      %296 = dma.done [#allocation21], 1024
    $region149: #{tpu_custom_call.1} parent=1 // pred_fallthru
      _
    // Predicated region
    $region150: #{tpu_custom_call.1} parent=1 // pred_check
      _
    $region151: #{tpu_custom_call.1} parent=1 // pred_check_branch
      %298 = sbr.rel (0) target = $region153
    $region152: #{tpu_custom_call.1} parent=1 // pred_region
      %299 = dma.done [#allocation21], 16
    $region153: #{tpu_custom_call.1} parent=1 // pred_fallthru
      _
    // Predicated region
    $region154: #{tpu_custom_call.1} parent=1 // pred_check
      _
    $region155: #{tpu_custom_call.1} parent=1 // pred_check_branch
      %301 = sbr.rel (0) target = $region157
    $region156: #{tpu_custom_call.1} parent=1 // pred_region
      %302 = dma.done [#allocation24], 32
    $region157: #{tpu_custom_call.1} parent=1 // pred_fallthru
      _
    // Predicated region
    $region158: #{tpu_custom_call.1} parent=1 // pred_check
      _
    $region159: #{tpu_custom_call.1} parent=1 // pred_check_branch
      %304 = sbr.rel (0) target = $region161
    $region160: #{tpu_custom_call.1} parent=1 // pred_region
      %305 = dma.done [#allocation24], 8192
    $region161: #{tpu_custom_call.1} parent=1 // pred_fallthru
      _
    // Predicated region
    $region162: #{tpu_custom_call.1} parent=1 // pred_check
      _
    $region163: #{tpu_custom_call.1} parent=1 // pred_check_branch
      %307 = sbr.rel (0) target = $region165
    $region164: #{tpu_custom_call.1} parent=1 // pred_region
      %308 = dma.done [#allocation27], 64
    $region165: #{tpu_custom_call.1} parent=1 // pred_fallthru
      _
    // Predicated region
    $region166: #{tpu_custom_call.1} parent=1 // pred_check
      _
    $region167: #{tpu_custom_call.1} parent=1 // pred_check_branch
      %310 = sbr.rel (0) target = $region169
    $region168: #{tpu_custom_call.1} parent=1 // pred_region
      %311 = dma.done [#allocation27], 8192
    $region169: #{tpu_custom_call.1} parent=1 // pred_fallthru
      _
    // Predicated region
    $region170: #{tpu_custom_call.1} parent=1 // pred_check
      _
    $region171: #{tpu_custom_call.1} parent=1 // pred_check_branch
      %313 = sbr.rel (0) target = $region173
    $region172: #{tpu_custom_call.1} parent=1 // pred_region
      %314 = dma.done [#allocation30], 2048
    $region173: #{tpu_custom_call.1} parent=1 // pred_fallthru
      _
    // Predicated region
    $region174: #{tpu_custom_call.1} parent=1 // pred_check
      _
    $region175: #{tpu_custom_call.1} parent=1 // pred_check_branch
      %316 = sbr.rel (0) target = $region177
    $region176: #{tpu_custom_call.1} parent=1 // pred_region
      %317 = dma.done [#allocation30], 512
    $region177: #{tpu_custom_call.1} parent=1 // pred_fallthru
      _
    %v319 = vld [vmem:[#allocation2] sm:$0xff]
    %v320 = vld [vmem:[#allocation5] sm:$0x3f]
    %v321 = vld [vmem:[#allocation7] sm:$0x1]
    %v323 = vlaneseq
    %v324 = vshrl.u32 %v323, 7
    %v325 = vsub.s32 0, %v324
    %v326 = vrot.slane %v321, %v325
    %vm328 = vcmask 48128
    %v330 = vsel %vm328, %v319, 0
    %vm332 = vcmask 1045504
    %v334 = vsel %vm332, %v320, 0
    %336 = vmatprep.subr.mxu0 0.0
    %337 = vmatpush1.msra.mxu0 %v334
    %338 = vmatprep.subr.mxu0 0.0
    %339 = vmatpush1.msra.mxu0 0.0
    %340 = vmatprep.subr.mxu0 0.0
    %341 = vmatpush1.msra.mxu0 0.0
    %342 = vmatprep.subr.mxu0 0.0
    %343 = vmatpush1.msra.mxu0 0.0
    %344 = vmatprep.subr.mxu0 0.0
    %345 = vmatpush1.msra.mxu0 0.0
    %346 = vmatprep.subr.mxu0 0.0
    %347 = vmatpush1.msra.mxu0 0.0
    %348 = vmatprep.subr.mxu0 0.0
    %349 = vmatpush1.msra.mxu0 0.0
    %350 = vmatprep.subr.mxu0 0.0
    %351 = vmatpush1.msra.mxu0 0.0
    %352 = vmatprep.subr.mxu0 0.0
    %353 = vmatpush1.msra.mxu0 0.0
    %354 = vmatprep.subr.mxu0 0.0
    %355 = vmatpush1.msra.mxu0 0.0
    %356 = vmatprep.subr.mxu0 0.0
    %357 = vmatpush1.msra.mxu0 0.0
    %358 = vmatprep.subr.mxu0 0.0
    %359 = vmatpush1.msra.mxu0 0.0
    %360 = vmatprep.subr.mxu0 0.0
    %361 = vmatpush1.msra.mxu0 0.0
    %362 = vmatprep.subr.mxu0 0.0
    %363 = vmatpush1.msra.mxu0 0.0
    %364 = vmatprep.subr.mxu0 0.0
    %365 = vmatpush1.msra.mxu0 0.0
    %366 = vmatprep.subr.mxu0 0.0
    %367 = vmatpush1.msra.mxu0 0.0
    %368 = vmatprep.subr.mxu0 0.0
    %369 = vmatpush1.msra.mxu0 0.0
    %370 = vmatprep.subr.mxu0 0.0
    %371 = vmatpush1.msra.mxu0 0.0
    %372 = vmatprep.subr.mxu0 0.0
    %373 = vmatpush1.msra.mxu0 0.0
    %374 = vmatprep.subr.mxu0 0.0
    %375 = vmatpush1.msra.mxu0 0.0
    %376 = vmatprep.subr.mxu0 0.0
    %377 = vmatpush1.msra.mxu0 0.0
    %378 = vmatprep.subr.mxu0 0.0
    %379 = vmatpush1.msra.mxu0 0.0
    %380 = vmatprep.subr.mxu0 0.0
    %381 = vmatpush1.msra.mxu0 0.0
    %382 = vmatprep.subr.mxu0 0.0
    %383 = vmatpush1.msra.mxu0 0.0
    %384 = vmatprep.subr.mxu0 0.0
    %385 = vmatpush1.msra.mxu0 0.0
    %386 = vmatprep.subr.mxu0 0.0
    %387 = vmatpush1.msra.mxu0 0.0
    %388 = vmatprep.subr.mxu0 0.0
    %389 = vmatpush1.msra.mxu0 0.0
    %390 = vmatprep.subr.mxu0 0.0
    %391 = vmatpush1.msra.mxu0 0.0
    %392 = vmatprep.subr.mxu0 0.0
    %393 = vmatpush1.msra.mxu0 0.0
    %394 = vmatprep.subr.mxu0 0.0
    %395 = vmatpush1.msra.mxu0 0.0
    %396 = vmatprep.subr.mxu0 0.0
    %397 = vmatpush1.msra.mxu0 0.0
    %398 = vmatprep.subr.mxu0 0.0
    %399 = vmatpush1.msra.mxu0 0.0
    %400 = vmatprep.mubr.f32.mxu0 0.0
    %401 = vmatmul.mubr.f32.gmra.mrb[0].mxu0 %v330
    %v402 = vpop.f32.mrb[0].mxu0
    %v403 = vadd.f32 %v326, %v402
    %v404 = vpop.f32.mrb[0].mxu0
    %405 = vdwg.mxu0
    %v406 = vand.u32 2147483647, %v403
    %vm407 = vcmp.le.f32.partialorder %v406, 0.7853982
    %vm408 = vcmp.lt.s32.totalorder %v403, 0
    %v409 = vand.u32 %v403, 2139095040
    %v410 = vshrl.u32 %v409, 23
    %v411 = vsub.s32 %v410, 127
    %v412 = vand.u32 2147483647, %v403
    %v413 = vand.u32 %v412, 8388607
    %v414 = vor.u32 %v413, 8388608
    %v415 = vsub.s32 0, %v414
    %v416 = vadd.s32 %v411, 1
    %vm417 = vcmp.gt.s32.totalorder %v416, 0
    %v418 = vsel %vm417, %v416, 0
    %v419 = vshrl.u32 %v418, 5
    %v420 = vand.u32 %v418, 31
    %v421 = vsub.s32 32, %v420
    %v422 = vshrl.u32 683565275, %v421
    %v423 = vshll.u32 683565275, %v420
    %v424 = vshrl.u32 2475754826, %v421
    %v425 = vor.u32 %v423, %v424
    %v426 = vshll.u32 2475754826, %v420
    %v427 = vshrl.u32 2131351028, %v421
    %v428 = vor.u32 %v426, %v427
    %v429 = vshll.u32 2131351028, %v420
    %v430 = vshrl.u32 2102212464, %v421
    %v431 = vor.u32 %v429, %v430
    %v432 = vshll.u32 2102212464, %v420
    %v433 = vshrl.u32 920167782, %v421
    %v434 = vor.u32 %v432, %v433
    %v435 = vshll.u32 920167782, %v420
    %v436 = vshrl.u32 1326507024, %v421
    %v437 = vor.u32 %v435, %v436
    %vm438 = vcmp.lt.s32.totalorder %v419, 1
    %vm439 = vcmp.lt.s32.totalorder %v419, 2
    %vm440 = vcmp.lt.s32.totalorder %v419, 3
    %vm441 = vcmp.lt.s32.totalorder %v419, 4
    %v442 = vsel %vm438, %v422, %v425
    %v443 = vsel %vm441, %v431, 2102212464
    %v444 = vsel %vm440, %v428, %v443
    %v445 = vsel %vm439, %v442, %v444
    %v446 = vsel %vm438, %v425, %v428
    %v447 = vsel %vm441, %v434, 920167782
    %v448 = vsel %vm440, %v431, %v447
    %v449 = vsel %vm439, %v446, %v448
    %v450 = vsel %vm438, %v428, %v431
    %v451 = vsel %vm441, %v437, 1326507024
    %v452 = vsel %vm440, %v434, %v451
    %v453 = vsel %vm439, %v450, %v452
    %v454 = vshll.u32 %v414, 8
    %v455 = vmul.u32.u64.compose %v454, %v453
    %v456 = vextract.low.u32 %v455
    %v457 = vextract.high.u32 %v455
    %v458 = vmul.u32.u64.compose %v454, %v449
    %v459 = vextract.low.u32 %v458
    %v460 = vextract.high.u32 %v458
    %v461 = vmul.u32 %v454, %v445
    %v462 = vadd.s32 %v457, %v459
    %vm463 = vc.u32 %v457, %v459
    %v464 = vadd.s32 %v460, 1
    %v465 = vsel %vm463, %v464, %v460
    %v466 = vadd.s32 %v461, %v465
    %v467 = vadd.s32 %v466, 536870912
    %v468 = vshrl.u32 %v467, 30
    %v469 = vshll.u32 %v468, 30
    %v470 = vsub.s32 %v466, %v469
    %vm471 = vcmp.lt.s32.totalorder %v470, 0
    %v472 = vsub.s32 0, %v470
    %v473 = vsel %vm471, %v472, %v470
    %v474 = vclz %v473
    %v475 = vsub.s32 %v474, 2
    %vm476 = vcmp.gt.s32.totalorder 0, %v475
    %v477 = vsel %vm476, 0, %v475
    %v478 = vsub.s32 32, %v477
    %v479 = vshll.u32 %v470, %v477
    %v480 = vshrl.u32 %v462, %v478
    %v481 = vor.u32 %v479, %v480
    %v482 = vsub.s32 4294967266, %v477
    %v483 = vadd.s32 %v482, 127
    %v484 = vshll.u32 %v483, 23
    %v485 = vor.u32 4788187, %v484
    %v486 = vand.u32 2147483647, %v485
    %v488 = vcvt.s32.f32 %v481
    %v489 = vmul.f32 %v488, %v486
    %v490 = vxor.u32 %v489, 2147483648
    %v491 = vsel %vm408, %v490, %v489
    %v492 = vsub.s32 4, %v468
    %v493 = vsel %vm408, %v492, %v468
    %v494 = vsel %vm407, %v403, %v491
    %v495 = vsel %vm407, 0, %v493
    %v496 = vcosq.f32.pop %v494
    %v497 = vsinq.f32.pop %v494
    %vm498 = vweird.f32 %v403
    %v499 = vadd.s32 %v495, 3
    %v500 = vand.u32 %v499, 3
    %vm501 = vcmp.lt.s32.totalorder %v500, 2
    %vm502 = vcmp.eq.s32.totalorder %v500, 0
    %v503 = vxor.u32 %v497, 2147483648
    %v504 = vsel %vm502, %v496, %v503
    %vm505 = vcmp.eq.s32.totalorder %v500, 2
    %v506 = vxor.u32 %v496, 2147483648
    %v507 = vsel %vm505, %v506, %v497
    %v508 = vsel %vm501, %v504, %v507
    %v509 = vsel %vm498, nan, %v508
    %v510 = vld [vmem:[#allocation8] sm:$0xf]
    %v511 = vld [vmem:[#allocation8 + $0x4] sm:$0xf]
    %v512 = vld [vmem:[#allocation8 + $0x8] sm:$0xf]
    %v513 = vld [vmem:[#allocation8 + $0xc] sm:$0xf]
    %v514 = vld [vmem:[#allocation8 + $0x10] sm:$0xf]
    %v515 = vld [vmem:[#allocation8 + $0x14] sm:$0xf]
    %v516 = vld [vmem:[#allocation10] sm:$0x1]
    %v517 = vpack.c.bf16 %v509, %v509
    %v519 = vlaneseq
    %v520 = vshrl.u32 %v519, 7
    %v521 = vsub.s32 0, %v520
    %v522 = vrot.slane %v516, %v521
    %v530 = vunpack.c.l.b16 %v510
    %v531 = vunpack.c.l.b16 %v511
    %v532 = vunpack.c.l.b16 %v512
    %v533 = vunpack.c.l.b16 %v513
    %v534 = vunpack.c.l.b16 %v514
    %v535 = vunpack.c.l.b16 %v515
    %v536 = vpack.c.b16 %v531, %v530
    %v537 = vpack.c.b16 %v533, %v532
    %v538 = vpack.c.b16 %v535, %v534
    %vm542 = vcmask 392192
    %v544 = vsel %vm542, %v517, 0
    %546 = vmatprep.subr.bf16.mxu0 0
    %547 = vmatpush1.bf16.msra.mxu0 %v536
    %548 = vmatprep.subr.bf16.mxu0 0
    %549 = vmatpush1.bf16.msra.mxu0 %v537
    %550 = vmatprep.subr.bf16.mxu0 0
    %551 = vmatpush1.bf16.msra.mxu0 %v538
    %552 = vmatprep.subr.bf16.mxu0 0
    %553 = vmatpush1.bf16.msra.mxu0 0
    %554 = vmatprep.subr.bf16.mxu0 0
    %555 = vmatpush1.bf16.msra.mxu0 0
    %556 = vmatprep.subr.bf16.mxu0 0
    %557 = vmatpush1.bf16.msra.mxu0 0
    %558 = vmatprep.subr.bf16.mxu0 0
    %559 = vmatpush1.bf16.msra.mxu0 0
    %560 = vmatprep.subr.bf16.mxu0 0
    %561 = vmatpush1.bf16.msra.mxu0 0
    %562 = vmatprep.subr.bf16.mxu0 0
    %563 = vmatpush1.bf16.msra.mxu0 0
    %564 = vmatprep.subr.bf16.mxu0 0
    %565 = vmatpush1.bf16.msra.mxu0 0
    %566 = vmatprep.subr.bf16.mxu0 0
    %567 = vmatpush1.bf16.msra.mxu0 0
    %568 = vmatprep.subr.bf16.mxu0 0
    %569 = vmatpush1.bf16.msra.mxu0 0
    %570 = vmatprep.subr.bf16.mxu0 0
    %571 = vmatpush1.bf16.msra.mxu0 0
    %572 = vmatprep.subr.bf16.mxu0 0
    %573 = vmatpush1.bf16.msra.mxu0 0
    %574 = vmatprep.subr.bf16.mxu0 0
    %575 = vmatpush1.bf16.msra.mxu0 0
    %576 = vmatprep.subr.bf16.mxu0 0
    %577 = vmatpush1.bf16.msra.mxu0 0
    %578 = vmatprep.mubr.bf16.mxu0 0
    %579 = vmatmul.mubr.bf16.gmra.mrb[0].mxu0 %v544
    %v580 = vpop.f32.mrb[0].mxu0
    %v581 = vadd.f32 %v522, %v580
    %v582 = vpop.f32.mrb[0].mxu0
    %v583 = vpop.f32.mrb[0].mxu0
    %v584 = vpop.f32.mrb[0].mxu0
    %585 = vdwg.mxu0
    %v586 = vld [vmem:[#allocation11] sm:$0xf]
    %v587 = vld [vmem:[#allocation11 + $0x4] sm:$0xf]
    %v588 = vld [vmem:[#allocation11 + $0x8] sm:$0xf]
    %v589 = vld [vmem:[#allocation11 + $0xc] sm:$0xf]
    %v590 = vld [vmem:[#allocation11 + $0x10] sm:$0xf]
    %v591 = vld [vmem:[#allocation11 + $0x14] sm:$0xf]
    %v592 = vld [vmem:[#allocation11 + $0x18] sm:$0xf]
    %v593 = vld [vmem:[#allocation11 + $0x1c] sm:$0xf]
    %v594 = vld [vmem:[#allocation11 + $0x20] sm:$0xf]
    %v595 = vld [vmem:[#allocation11 + $0x24] sm:$0xf]
    %v596 = vld [vmem:[#allocation11 + $0x28] sm:$0xf]
    %v597 = vld [vmem:[#allocation11 + $0x2c] sm:$0xf]
    %v598 = vld [vmem:[#allocation11 + $0x30] sm:$0xf]
    %v599 = vld [vmem:[#allocation11 + $0x34] sm:$0xf]
    %v600 = vld [vmem:[#allocation11 + $0x38] sm:$0xf]
    %v601 = vld [vmem:[#allocation11 + $0x3c] sm:$0xf]
    %v602 = vld [vmem:[#allocation13] sm:$0x1]
    %v603 = vmax.f32 %v581, 0.0
    %v604 = vpack.c.bf16 %v603, %v603
    %v606 = vlaneseq
    %v607 = vshrl.u32 %v606, 7
    %v608 = vsub.s32 0, %v607
    %v609 = vrot.slane %v602, %v608
    %v627 = vunpack.c.l.b16 %v586
    %v628 = vunpack.c.l.b16 %v587
    %v629 = vunpack.c.l.b16 %v588
    %v630 = vunpack.c.l.b16 %v589
    %v631 = vunpack.c.l.b16 %v590
    %v632 = vunpack.c.l.b16 %v591
    %v633 = vunpack.c.l.b16 %v592
    %v634 = vunpack.c.l.b16 %v593
    %v635 = vunpack.c.l.b16 %v594
    %v636 = vunpack.c.l.b16 %v595
    %v637 = vunpack.c.l.b16 %v596
    %v638 = vunpack.c.l.b16 %v597
    %v639 = vunpack.c.l.b16 %v598
    %v640 = vunpack.c.l.b16 %v599
    %v641 = vunpack.c.l.b16 %v600
    %v642 = vunpack.c.l.b16 %v601
    %v643 = vpack.c.b16 %v628, %v627
    %v644 = vpack.c.b16 %v630, %v629
    %v645 = vpack.c.b16 %v632, %v631
    %v646 = vpack.c.b16 %v634, %v633
    %v647 = vpack.c.b16 %v636, %v635
    %v648 = vpack.c.b16 %v638, %v637
    %v649 = vpack.c.b16 %v640, %v639
    %v650 = vpack.c.b16 %v642, %v641
    %659 = vmatprep.subr.bf16.mxu0 0
    %660 = vmatpush1.bf16.msra.mxu0 %v643
    %661 = vmatprep.subr.bf16.mxu0 0
    %662 = vmatpush1.bf16.msra.mxu0 %v644
    %663 = vmatprep.subr.bf16.mxu0 0
    %664 = vmatpush1.bf16.msra.mxu0 %v645
    %665 = vmatprep.subr.bf16.mxu0 0
    %666 = vmatpush1.bf16.msra.mxu0 %v646
    %667 = vmatprep.subr.bf16.mxu0 0
    %668 = vmatpush1.bf16.msra.mxu0 %v647
    %669 = vmatprep.subr.bf16.mxu0 0
    %670 = vmatpush1.bf16.msra.mxu0 %v648
    %671 = vmatprep.subr.bf16.mxu0 0
    %672 = vmatpush1.bf16.msra.mxu0 %v649
    %673 = vmatprep.subr.bf16.mxu0 0
    %674 = vmatpush1.bf16.msra.mxu0 %v650
    %675 = vmatprep.subr.bf16.mxu0 0
    %676 = vmatpush1.bf16.msra.mxu0 0
    %677 = vmatprep.subr.bf16.mxu0 0
    %678 = vmatpush1.bf16.msra.mxu0 0
    %679 = vmatprep.subr.bf16.mxu0 0
    %680 = vmatpush1.bf16.msra.mxu0 0
    %681 = vmatprep.subr.bf16.mxu0 0
    %682 = vmatpush1.bf16.msra.mxu0 0
    %683 = vmatprep.subr.bf16.mxu0 0
    %684 = vmatpush1.bf16.msra.mxu0 0
    %685 = vmatprep.subr.bf16.mxu0 0
    %686 = vmatpush1.bf16.msra.mxu0 0
    %687 = vmatprep.subr.bf16.mxu0 0
    %688 = vmatpush1.bf16.msra.mxu0 0
    %689 = vmatprep.subr.bf16.mxu0 0
    %690 = vmatpush1.bf16.msra.mxu0 0
    %691 = vmatprep.mubr.bf16.mxu0 0
    %692 = vmatmul.mubr.bf16.gmra.mrb[0].mxu0 %v604
    %v693 = vpop.f32.mrb[0].mxu0
    %v694 = vadd.f32 %v609, %v693
    %v695 = vpop.f32.mrb[0].mxu0
    %v696 = vpop.f32.mrb[0].mxu0
    %v697 = vpop.f32.mrb[0].mxu0
    %698 = vdwg.mxu0
    %v699 = vld [vmem:[#allocation14] sm:$0xf]
    %v700 = vld [vmem:[#allocation14 + $0x4] sm:$0xf]
    %v701 = vld [vmem:[#allocation14 + $0x8] sm:$0xf]
    %v702 = vld [vmem:[#allocation14 + $0xc] sm:$0xf]
    %v703 = vld [vmem:[#allocation14 + $0x10] sm:$0xf]
    %v704 = vld [vmem:[#allocation14 + $0x14] sm:$0xf]
    %v705 = vld [vmem:[#allocation14 + $0x18] sm:$0xf]
    %v706 = vld [vmem:[#allocation14 + $0x1c] sm:$0xf]
    %v707 = vld [vmem:[#allocation14 + $0x20] sm:$0xf]
    %v708 = vld [vmem:[#allocation14 + $0x24] sm:$0xf]
    %v709 = vld [vmem:[#allocation14 + $0x28] sm:$0xf]
    %v710 = vld [vmem:[#allocation14 + $0x2c] sm:$0xf]
    %v711 = vld [vmem:[#allocation14 + $0x30] sm:$0xf]
    %v712 = vld [vmem:[#allocation14 + $0x34] sm:$0xf]
    %v713 = vld [vmem:[#allocation14 + $0x38] sm:$0xf]
    %v714 = vld [vmem:[#allocation14 + $0x3c] sm:$0xf]
    %v715 = vld [vmem:[#allocation16] sm:$0x1]
    %v716 = vmax.f32 %v694, 0.0
    %v717 = vpack.c.bf16 %v716, %v716
    %v719 = vlaneseq
    %v720 = vshrl.u32 %v719, 7
    %v721 = vsub.s32 0, %v720
    %v722 = vrot.slane %v715, %v721
    %v740 = vunpack.c.l.b16 %v699
    %v741 = vunpack.c.l.b16 %v700
    %v742 = vunpack.c.l.b16 %v701
    %v743 = vunpack.c.l.b16 %v702
    %v744 = vunpack.c.l.b16 %v703
    %v745 = vunpack.c.l.b16 %v704
    %v746 = vunpack.c.l.b16 %v705
    %v747 = vunpack.c.l.b16 %v706
    %v748 = vunpack.c.l.b16 %v707
    %v749 = vunpack.c.l.b16 %v708
    %v750 = vunpack.c.l.b16 %v709
    %v751 = vunpack.c.l.b16 %v710
    %v752 = vunpack.c.l.b16 %v711
    %v753 = vunpack.c.l.b16 %v712
    %v754 = vunpack.c.l.b16 %v713
    %v755 = vunpack.c.l.b16 %v714
    %v756 = vpack.c.b16 %v741, %v740
    %v757 = vpack.c.b16 %v743, %v742
    %v758 = vpack.c.b16 %v745, %v744
    %v759 = vpack.c.b16 %v747, %v746
    %v760 = vpack.c.b16 %v749, %v748
    %v761 = vpack.c.b16 %v751, %v750
    %v762 = vpack.c.b16 %v753, %v752
    %v763 = vpack.c.b16 %v755, %v754
    %772 = vmatprep.subr.bf16.mxu0 0
    %773 = vmatpush1.bf16.msra.mxu0 %v756
    %774 = vmatprep.subr.bf16.mxu0 0
    %775 = vmatpush1.bf16.msra.mxu0 %v757
    %776 = vmatprep.subr.bf16.mxu0 0
    %777 = vmatpush1.bf16.msra.mxu0 %v758
    %778 = vmatprep.subr.bf16.mxu0 0
    %779 = vmatpush1.bf16.msra.mxu0 %v759
    %780 = vmatprep.subr.bf16.mxu0 0
    %781 = vmatpush1.bf16.msra.mxu0 %v760
    %782 = vmatprep.subr.bf16.mxu0 0
    %783 = vmatpush1.bf16.msra.mxu0 %v761
    %784 = vmatprep.subr.bf16.mxu0 0
    %785 = vmatpush1.bf16.msra.mxu0 %v762
    %786 = vmatprep.subr.bf16.mxu0 0
    %787 = vmatpush1.bf16.msra.mxu0 %v763
    %788 = vmatprep.subr.bf16.mxu0 0
    %789 = vmatpush1.bf16.msra.mxu0 0
    %790 = vmatprep.subr.bf16.mxu0 0
    %791 = vmatpush1.bf16.msra.mxu0 0
    %792 = vmatprep.subr.bf16.mxu0 0
    %793 = vmatpush1.bf16.msra.mxu0 0
    %794 = vmatprep.subr.bf16.mxu0 0
    %795 = vmatpush1.bf16.msra.mxu0 0
    %796 = vmatprep.subr.bf16.mxu0 0
    %797 = vmatpush1.bf16.msra.mxu0 0
    %798 = vmatprep.subr.bf16.mxu0 0
    %799 = vmatpush1.bf16.msra.mxu0 0
    %800 = vmatprep.subr.bf16.mxu0 0
    %801 = vmatpush1.bf16.msra.mxu0 0
    %802 = vmatprep.subr.bf16.mxu0 0
    %803 = vmatpush1.bf16.msra.mxu0 0
    %804 = vmatprep.mubr.bf16.mxu0 0
    %805 = vmatmul.mubr.bf16.gmra.mrb[0].mxu0 %v717
    %v806 = vpop.f32.mrb[0].mxu0
    %v807 = vadd.f32 %v722, %v806
    %v808 = vpop.f32.mrb[0].mxu0
    %v809 = vpop.f32.mrb[0].mxu0
    %v810 = vpop.f32.mrb[0].mxu0
    %811 = vdwg.mxu0
    %v812 = vld [vmem:[#allocation17] sm:$0xf]
    %v813 = vld [vmem:[#allocation17 + $0x4] sm:$0xf]
    %v814 = vld [vmem:[#allocation17 + $0x8] sm:$0xf]
    %v815 = vld [vmem:[#allocation17 + $0xc] sm:$0xf]
    %v816 = vld [vmem:[#allocation17 + $0x10] sm:$0xf]
    %v817 = vld [vmem:[#allocation17 + $0x14] sm:$0xf]
    %v818 = vld [vmem:[#allocation17 + $0x18] sm:$0xf]
    %v819 = vld [vmem:[#allocation17 + $0x1c] sm:$0xf]
    %v820 = vld [vmem:[#allocation17 + $0x20] sm:$0xf]
    %v821 = vld [vmem:[#allocation17 + $0x24] sm:$0xf]
    %v822 = vld [vmem:[#allocation17 + $0x28] sm:$0xf]
    %v823 = vld [vmem:[#allocation17 + $0x2c] sm:$0xf]
    %v824 = vld [vmem:[#allocation17 + $0x30] sm:$0xf]
    %v825 = vld [vmem:[#allocation17 + $0x34] sm:$0xf]
    %v826 = vld [vmem:[#allocation17 + $0x38] sm:$0xf]
    %v827 = vld [vmem:[#allocation17 + $0x3c] sm:$0xf]
    %v828 = vld [vmem:[#allocation19] sm:$0x1]
    %v829 = vmax.f32 %v807, 0.0
    %v830 = vpack.c.bf16 %v829, %v829
    %v832 = vlaneseq
    %v833 = vshrl.u32 %v832, 7
    %v834 = vsub.s32 0, %v833
    %v835 = vrot.slane %v828, %v834
    %v853 = vunpack.c.l.b16 %v812
    %v854 = vunpack.c.l.b16 %v813
    %v855 = vunpack.c.l.b16 %v814
    %v856 = vunpack.c.l.b16 %v815
    %v857 = vunpack.c.l.b16 %v816
    %v858 = vunpack.c.l.b16 %v817
    %v859 = vunpack.c.l.b16 %v818
    %v860 = vunpack.c.l.b16 %v819
    %v861 = vunpack.c.l.b16 %v820
    %v862 = vunpack.c.l.b16 %v821
    %v863 = vunpack.c.l.b16 %v822
    %v864 = vunpack.c.l.b16 %v823
    %v865 = vunpack.c.l.b16 %v824
    %v866 = vunpack.c.l.b16 %v825
    %v867 = vunpack.c.l.b16 %v826
    %v868 = vunpack.c.l.b16 %v827
    %v869 = vpack.c.b16 %v854, %v853
    %v870 = vpack.c.b16 %v856, %v855
    %v871 = vpack.c.b16 %v858, %v857
    %v872 = vpack.c.b16 %v860, %v859
    %v873 = vpack.c.b16 %v862, %v861
    %v874 = vpack.c.b16 %v864, %v863
    %v875 = vpack.c.b16 %v866, %v865
    %v876 = vpack.c.b16 %v868, %v867
    %885 = vmatprep.subr.bf16.mxu0 0
    %886 = vmatpush1.bf16.msra.mxu0 %v869
    %887 = vmatprep.subr.bf16.mxu0 0
    %888 = vmatpush1.bf16.msra.mxu0 %v870
    %889 = vmatprep.subr.bf16.mxu0 0
    %890 = vmatpush1.bf16.msra.mxu0 %v871
    %891 = vmatprep.subr.bf16.mxu0 0
    %892 = vmatpush1.bf16.msra.mxu0 %v872
    %893 = vmatprep.subr.bf16.mxu0 0
    %894 = vmatpush1.bf16.msra.mxu0 %v873
    %895 = vmatprep.subr.bf16.mxu0 0
    %896 = vmatpush1.bf16.msra.mxu0 %v874
    %897 = vmatprep.subr.bf16.mxu0 0
    %898 = vmatpush1.bf16.msra.mxu0 %v875
    %899 = vmatprep.subr.bf16.mxu0 0
    %900 = vmatpush1.bf16.msra.mxu0 %v876
    %901 = vmatprep.subr.bf16.mxu0 0
    %902 = vmatpush1.bf16.msra.mxu0 0
    %903 = vmatprep.subr.bf16.mxu0 0
    %904 = vmatpush1.bf16.msra.mxu0 0
    %905 = vmatprep.subr.bf16.mxu0 0
    %906 = vmatpush1.bf16.msra.mxu0 0
    %907 = vmatprep.subr.bf16.mxu0 0
    %908 = vmatpush1.bf16.msra.mxu0 0
    %909 = vmatprep.subr.bf16.mxu0 0
    %910 = vmatpush1.bf16.msra.mxu0 0
    %911 = vmatprep.subr.bf16.mxu0 0
    %912 = vmatpush1.bf16.msra.mxu0 0
    %913 = vmatprep.subr.bf16.mxu0 0
    %914 = vmatpush1.bf16.msra.mxu0 0
    %915 = vmatprep.subr.bf16.mxu0 0
    %916 = vmatpush1.bf16.msra.mxu0 0
    %917 = vmatprep.mubr.bf16.mxu0 0
    %918 = vmatmul.mubr.bf16.gmra.mrb[0].mxu0 %v830
    %v919 = vpop.f32.mrb[0].mxu0
    %v920 = vadd.f32 %v835, %v919
    %v921 = vpop.f32.mrb[0].mxu0
    %v922 = vpop.f32.mrb[0].mxu0
    %v923 = vpop.f32.mrb[0].mxu0
    %924 = vdwg.mxu0
    %v925 = vld [vmem:[#allocation20] sm:$0xf]
    %v926 = vld [vmem:[#allocation20 + $0x4] sm:$0xf]
    %v927 = vld [vmem:[#allocation20 + $0x8] sm:$0xf]
    %v928 = vld [vmem:[#allocation20 + $0xc] sm:$0xf]
    %v929 = vld [vmem:[#allocation20 + $0x10] sm:$0xf]
    %v930 = vld [vmem:[#allocation20 + $0x14] sm:$0xf]
    %v931 = vld [vmem:[#allocation20 + $0x18] sm:$0xf]
    %v932 = vld [vmem:[#allocation20 + $0x1c] sm:$0xf]
    %v933 = vld [vmem:[#allocation20 + $0x20] sm:$0xf]
    %v934 = vld [vmem:[#allocation20 + $0x24] sm:$0xf]
    %v935 = vld [vmem:[#allocation20 + $0x28] sm:$0xf]
    %v936 = vld [vmem:[#allocation20 + $0x2c] sm:$0xf]
    %v937 = vld [vmem:[#allocation20 + $0x30] sm:$0xf]
    %v938 = vld [vmem:[#allocation20 + $0x34] sm:$0xf]
    %v939 = vld [vmem:[#allocation20 + $0x38] sm:$0xf]
    %v940 = vld [vmem:[#allocation20 + $0x3c] sm:$0xf]
    %v941 = vld [vmem:[#allocation22] sm:$0x1]
    %v942 = vmax.f32 %v920, 0.0
    %v943 = vpack.c.bf16 %v942, %v942
    %v945 = vlaneseq
    %v946 = vshrl.u32 %v945, 7
    %v947 = vsub.s32 0, %v946
    %v948 = vrot.slane %v941, %v947
    %v966 = vunpack.c.l.b16 %v925
    %v967 = vunpack.c.l.b16 %v926
    %v968 = vunpack.c.l.b16 %v927
    %v969 = vunpack.c.l.b16 %v928
    %v970 = vunpack.c.l.b16 %v929
    %v971 = vunpack.c.l.b16 %v930
    %v972 = vunpack.c.l.b16 %v931
    %v973 = vunpack.c.l.b16 %v932
    %v974 = vunpack.c.l.b16 %v933
    %v975 = vunpack.c.l.b16 %v934
    %v976 = vunpack.c.l.b16 %v935
    %v977 = vunpack.c.l.b16 %v936
    %v978 = vunpack.c.l.b16 %v937
    %v979 = vunpack.c.l.b16 %v938
    %v980 = vunpack.c.l.b16 %v939
    %v981 = vunpack.c.l.b16 %v940
    %v982 = vpack.c.b16 %v967, %v966
    %v983 = vpack.c.b16 %v969, %v968
    %v984 = vpack.c.b16 %v971, %v970
    %v985 = vpack.c.b16 %v973, %v972
    %v986 = vpack.c.b16 %v975, %v974
    %v987 = vpack.c.b16 %v977, %v976
    %v988 = vpack.c.b16 %v979, %v978
    %v989 = vpack.c.b16 %v981, %v980
    %998 = vmatprep.subr.bf16.mxu0 0
    %999 = vmatpush1.bf16.msra.mxu0 %v982
    %1000 = vmatprep.subr.bf16.mxu0 0
    %1001 = vmatpush1.bf16.msra.mxu0 %v983
    %1002 = vmatprep.subr.bf16.mxu0 0
    %1003 = vmatpush1.bf16.msra.mxu0 %v984
    %1004 = vmatprep.subr.bf16.mxu0 0
    %1005 = vmatpush1.bf16.msra.mxu0 %v985
    %1006 = vmatprep.subr.bf16.mxu0 0
    %1007 = vmatpush1.bf16.msra.mxu0 %v986
    %1008 = vmatprep.subr.bf16.mxu0 0
    %1009 = vmatpush1.bf16.msra.mxu0 %v987
    %1010 = vmatprep.subr.bf16.mxu0 0
    %1011 = vmatpush1.bf16.msra.mxu0 %v988
    %1012 = vmatprep.subr.bf16.mxu0 0
    %1013 = vmatpush1.bf16.msra.mxu0 %v989
    %1014 = vmatprep.subr.bf16.mxu0 0
    %1015 = vmatpush1.bf16.msra.mxu0 0
    %1016 = vmatprep.subr.bf16.mxu0 0
    %1017 = vmatpush1.bf16.msra.mxu0 0
    %1018 = vmatprep.subr.bf16.mxu0 0
    %1019 = vmatpush1.bf16.msra.mxu0 0
    %1020 = vmatprep.subr.bf16.mxu0 0
    %1021 = vmatpush1.bf16.msra.mxu0 0
    %1022 = vmatprep.subr.bf16.mxu0 0
    %1023 = vmatpush1.bf16.msra.mxu0 0
    %1024 = vmatprep.subr.bf16.mxu0 0
    %1025 = vmatpush1.bf16.msra.mxu0 0
    %1026 = vmatprep.subr.bf16.mxu0 0
    %1027 = vmatpush1.bf16.msra.mxu0 0
    %1028 = vmatprep.subr.bf16.mxu0 0
    %1029 = vmatpush1.bf16.msra.mxu0 0
    %1030 = vmatprep.mubr.bf16.mxu0 0
    %1031 = vmatmul.mubr.bf16.gmra.mrb[0].mxu0 %v943
    %v1032 = vpop.f32.mrb[0].mxu0
    %v1033 = vadd.f32 %v948, %v1032
    %v1034 = vpop.f32.mrb[0].mxu0
    %v1035 = vpop.f32.mrb[0].mxu0
    %v1036 = vpop.f32.mrb[0].mxu0
    %1037 = vdwg.mxu0
    %v1038 = vld [vmem:[%s13] sm:$0xff]
    %v1039 = vld [vmem:[%s13 + $0x8] sm:$0xff]
    %v1040 = vld [vmem:[%s13 + $0x10] sm:$0xff]
    %v1041 = vld [vmem:[%s13 + $0x18] sm:$0xff]
    %v1042 = vld [vmem:[%s13 + $0x20] sm:$0xff]
    %v1043 = vld [vmem:[%s13 + $0x28] sm:$0xff]
    %v1044 = vld [vmem:[%s13 + $0x30] sm:$0xff]
    %v1045 = vld [vmem:[%s13 + $0x38] sm:$0xff]
    %v1046 = vld [vmem:[%s13 + $0x40] sm:$0xff]
    %v1047 = vld [vmem:[%s13 + $0x48] sm:$0xff]
    %v1048 = vld [vmem:[%s13 + $0x50] sm:$0xff]
    %v1049 = vld [vmem:[%s13 + $0x58] sm:$0xff]
    %v1050 = vld [vmem:[%s13 + $0x60] sm:$0xff]
    %v1051 = vld [vmem:[%s13 + $0x68] sm:$0xff]
    %v1052 = vld [vmem:[%s13 + $0x70] sm:$0xff]
    %v1053 = vld [vmem:[%s13 + $0x78] sm:$0xff]
    %v1054 = vld [vmem:[#allocation23] sm:$0x3]
    %v1055 = vmax.f32 %v1033, 0.0
    %v1056 = vpack.c.bf16 %v1055, %v1055
    %v1058 = vlaneseq
    %v1059 = vshrl.u32 %v1058, 7
    %v1060 = vsub.s32 0, %v1059
    %v1061 = vrot.slane %v1054, %v1060
    %v1062 = vlaneseq
    %v1063 = vshrl.u32 %v1062, 7
    %v1064 = vsub.s32 1, %v1063
    %v1065 = vrot.slane %v1054, %v1064
    %v1084 = vunpack.c.l.b16 %v1038
    %v1085 = vunpack.c.h.b16 %v1038
    %v1086 = vunpack.c.l.b16 %v1039
    %v1087 = vunpack.c.h.b16 %v1039
    %v1088 = vunpack.c.l.b16 %v1040
    %v1089 = vunpack.c.h.b16 %v1040
    %v1090 = vunpack.c.l.b16 %v1041
    %v1091 = vunpack.c.h.b16 %v1041
    %v1092 = vunpack.c.l.b16 %v1042
    %v1093 = vunpack.c.h.b16 %v1042
    %v1094 = vunpack.c.l.b16 %v1043
    %v1095 = vunpack.c.h.b16 %v1043
    %v1096 = vunpack.c.l.b16 %v1044
    %v1097 = vunpack.c.h.b16 %v1044
    %v1098 = vunpack.c.l.b16 %v1045
    %v1099 = vunpack.c.h.b16 %v1045
    %v1100 = vunpack.c.l.b16 %v1046
    %v1101 = vunpack.c.h.b16 %v1046
    %v1102 = vunpack.c.l.b16 %v1047
    %v1103 = vunpack.c.h.b16 %v1047
    %v1104 = vunpack.c.l.b16 %v1048
    %v1105 = vunpack.c.h.b16 %v1048
    %v1106 = vunpack.c.l.b16 %v1049
    %v1107 = vunpack.c.h.b16 %v1049
    %v1108 = vunpack.c.l.b16 %v1050
    %v1109 = vunpack.c.h.b16 %v1050
    %v1110 = vunpack.c.l.b16 %v1051
    %v1111 = vunpack.c.h.b16 %v1051
    %v1112 = vunpack.c.l.b16 %v1052
    %v1113 = vunpack.c.h.b16 %v1052
    %v1114 = vunpack.c.l.b16 %v1053
    %v1115 = vunpack.c.h.b16 %v1053
    %v1116 = vpack.c.b16 %v1086, %v1084
    %v1117 = vpack.c.b16 %v1087, %v1085
    %v1118 = vpack.c.b16 %v1090, %v1088
    %v1119 = vpack.c.b16 %v1091, %v1089
    %v1120 = vpack.c.b16 %v1094, %v1092
    %v1121 = vpack.c.b16 %v1095, %v1093
    %v1122 = vpack.c.b16 %v1098, %v1096
    %v1123 = vpack.c.b16 %v1099, %v1097
    %v1124 = vpack.c.b16 %v1102, %v1100
    %v1125 = vpack.c.b16 %v1103, %v1101
    %v1126 = vpack.c.b16 %v1106, %v1104
    %v1127 = vpack.c.b16 %v1107, %v1105
    %v1128 = vpack.c.b16 %v1110, %v1108
    %v1129 = vpack.c.b16 %v1111, %v1109
    %v1130 = vpack.c.b16 %v1114, %v1112
    %v1131 = vpack.c.b16 %v1115, %v1113
    %1148 = vmatprep.subr.bf16.mxu0 %v1117
    %1149 = vmatpush1.bf16.msra.mxu0 %v1116
    %1150 = vmatprep.subr.bf16.mxu0 %v1119
    %1151 = vmatpush1.bf16.msra.mxu0 %v1118
    %1152 = vmatprep.subr.bf16.mxu0 %v1121
    %1153 = vmatpush1.bf16.msra.mxu0 %v1120
    %1154 = vmatprep.subr.bf16.mxu0 %v1123
    %1155 = vmatpush1.bf16.msra.mxu0 %v1122
    %1156 = vmatprep.subr.bf16.mxu0 %v1125
    %1157 = vmatpush1.bf16.msra.mxu0 %v1124
    %1158 = vmatprep.subr.bf16.mxu0 %v1127
    %1159 = vmatpush1.bf16.msra.mxu0 %v1126
    %1160 = vmatprep.subr.bf16.mxu0 %v1129
    %1161 = vmatpush1.bf16.msra.mxu0 %v1128
    %1162 = vmatprep.subr.bf16.mxu0 %v1131
    %1163 = vmatpush1.bf16.msra.mxu0 %v1130
    %1164 = vmatprep.subr.bf16.mxu0 0
    %1165 = vmatpush1.bf16.msra.mxu0 0
    %1166 = vmatprep.subr.bf16.mxu0 0
    %1167 = vmatpush1.bf16.msra.mxu0 0
    %1168 = vmatprep.subr.bf16.mxu0 0
    %1169 = vmatpush1.bf16.msra.mxu0 0
    %1170 = vmatprep.subr.bf16.mxu0 0
    %1171 = vmatpush1.bf16.msra.mxu0 0
    %1172 = vmatprep.subr.bf16.mxu0 0
    %1173 = vmatpush1.bf16.msra.mxu0 0
    %1174 = vmatprep.subr.bf16.mxu0 0
    %1175 = vmatpush1.bf16.msra.mxu0 0
    %1176 = vmatprep.subr.bf16.mxu0 0
    %1177 = vmatpush1.bf16.msra.mxu0 0
    %1178 = vmatprep.subr.bf16.mxu0 0
    %1179 = vmatpush1.bf16.msra.mxu0 0
    %1180 = vmatprep.mubr.bf16.mxu0 0
    %1181 = vmatmul.mubr.bf16.gmra.mrb[0].mxu0 %v1056
    %v1182 = vpop.f32.mrb[0].mxu0
    %v1183 = vadd.f32 %v1061, %v1182
    %v1184 = vpop.f32.mrb[0].mxu0
    %v1185 = vadd.f32 %v1065, %v1184
    %v1186 = vpop.f32.mrb[0].mxu0
    %v1187 = vpop.f32.mrb[0].mxu0
    %1188 = vdwg.mxu0
    %v1189 = vld [vmem:[#allocation25] sm:$0xff]
    %v1190 = vld [vmem:[#allocation25 + $0x8] sm:$0xff]
    %v1191 = vld [vmem:[#allocation25 + $0x10] sm:$0xff]
    %v1192 = vld [vmem:[#allocation25 + $0x18] sm:$0xff]
    %v1193 = vld [vmem:[#allocation25 + $0x20] sm:$0xff]
    %v1194 = vld [vmem:[#allocation25 + $0x28] sm:$0xff]
    %v1195 = vld [vmem:[#allocation25 + $0x30] sm:$0xff]
    %v1196 = vld [vmem:[#allocation25 + $0x38] sm:$0xff]
    %v1197 = vld [vmem:[#allocation25 + $0x40] sm:$0xff]
    %v1198 = vld [vmem:[#allocation25 + $0x48] sm:$0xff]
    %v1199 = vld [vmem:[#allocation25 + $0x50] sm:$0xff]
    %v1200 = vld [vmem:[#allocation25 + $0x58] sm:$0xff]
    %v1201 = vld [vmem:[#allocation25 + $0x60] sm:$0xff]
    %v1202 = vld [vmem:[#allocation25 + $0x68] sm:$0xff]
    %v1203 = vld [vmem:[#allocation25 + $0x70] sm:$0xff]
    %v1204 = vld [vmem:[#allocation25 + $0x78] sm:$0xff]
    %v1205 = vld [vmem:[#allocation25 + $0x80] sm:$0xff]
    %v1206 = vld [vmem:[#allocation25 + $0x88] sm:$0xff]
    %v1207 = vld [vmem:[#allocation25 + $0x90] sm:$0xff]
    %v1208 = vld [vmem:[#allocation25 + $0x98] sm:$0xff]
    %v1209 = vld [vmem:[#allocation25 + $0xa0] sm:$0xff]
    %v1210 = vld [vmem:[#allocation25 + $0xa8] sm:$0xff]
    %v1211 = vld [vmem:[#allocation25 + $0xb0] sm:$0xff]
    %v1212 = vld [vmem:[#allocation25 + $0xb8] sm:$0xff]
    %v1213 = vld [vmem:[#allocation25 + $0xc0] sm:$0xff]
    %v1214 = vld [vmem:[#allocation25 + $0xc8] sm:$0xff]
    %v1215 = vld [vmem:[#allocation25 + $0xd0] sm:$0xff]
    %v1216 = vld [vmem:[#allocation25 + $0xd8] sm:$0xff]
    %v1217 = vld [vmem:[#allocation25 + $0xe0] sm:$0xff]
    %v1218 = vld [vmem:[#allocation25 + $0xe8] sm:$0xff]
    %v1219 = vld [vmem:[#allocation25 + $0xf0] sm:$0xff]
    %v1220 = vld [vmem:[#allocation25 + $0xf8] sm:$0xff]
    %v1221 = vld [vmem:[#allocation25 + $0x100] sm:$0xff]
    %v1222 = vld [vmem:[#allocation25 + $0x108] sm:$0xff]
    %v1223 = vld [vmem:[#allocation25 + $0x110] sm:$0xff]
    %v1224 = vld [vmem:[#allocation25 + $0x118] sm:$0xff]
    %v1225 = vld [vmem:[#allocation25 + $0x120] sm:$0xff]
    %v1226 = vld [vmem:[#allocation25 + $0x128] sm:$0xff]
    %v1227 = vld [vmem:[#allocation25 + $0x130] sm:$0xff]
    %v1228 = vld [vmem:[#allocation25 + $0x138] sm:$0xff]
    %v1229 = vld [vmem:[#allocation25 + $0x140] sm:$0xff]
    %v1230 = vld [vmem:[#allocation25 + $0x148] sm:$0xff]
    %v1231 = vld [vmem:[#allocation25 + $0x150] sm:$0xff]
    %v1232 = vld [vmem:[#allocation25 + $0x158] sm:$0xff]
    %v1233 = vld [vmem:[#allocation25 + $0x160] sm:$0xff]
    %v1234 = vld [vmem:[#allocation25 + $0x168] sm:$0xff]
    %v1235 = vld [vmem:[#allocation25 + $0x170] sm:$0xff]
    %v1236 = vld [vmem:[#allocation25 + $0x178] sm:$0xff]
    %v1237 = vld [vmem:[#allocation25 + $0x180] sm:$0xff]
    %v1238 = vld [vmem:[#allocation25 + $0x188] sm:$0xff]
    %v1239 = vld [vmem:[#allocation25 + $0x190] sm:$0xff]
    %v1240 = vld [vmem:[#allocation25 + $0x198] sm:$0xff]
    %v1241 = vld [vmem:[#allocation25 + $0x1a0] sm:$0xff]
    %v1242 = vld [vmem:[#allocation25 + $0x1a8] sm:$0xff]
    %v1243 = vld [vmem:[#allocation25 + $0x1b0] sm:$0xff]
    %v1244 = vld [vmem:[#allocation25 + $0x1b8] sm:$0xff]
    %v1245 = vld [vmem:[#allocation25 + $0x1c0] sm:$0xff]
    %v1246 = vld [vmem:[#allocation25 + $0x1c8] sm:$0xff]
    %v1247 = vld [vmem:[#allocation25 + $0x1d0] sm:$0xff]
    %v1248 = vld [vmem:[#allocation25 + $0x1d8] sm:$0xff]
    %v1249 = vld [vmem:[#allocation25 + $0x1e0] sm:$0xff]
    %v1250 = vld [vmem:[#allocation25 + $0x1e8] sm:$0xff]
    %v1251 = vld [vmem:[#allocation25 + $0x1f0] sm:$0xff]
    %v1252 = vld [vmem:[#allocation25 + $0x1f8] sm:$0xff]
    %v1253 = vld [vmem:[#allocation26] sm:$0xf]
    %v1254 = vmax.f32 %v1183, 0.0
    %v1255 = vmax.f32 %v1185, 0.0
    %v1256 = vpack.c.bf16 %v1254, %v1254
    %v1257 = vpack.c.bf16 %v1255, %v1255
    %v1259 = vlaneseq
    %v1260 = vshrl.u32 %v1259, 7
    %v1261 = vsub.s32 0, %v1260
    %v1262 = vrot.slane %v1253, %v1261
    %v1263 = vlaneseq
    %v1264 = vshrl.u32 %v1263, 7
    %v1265 = vsub.s32 1, %v1264
    %v1266 = vrot.slane %v1253, %v1265
    %v1267 = vlaneseq
    %v1268 = vshrl.u32 %v1267, 7
    %v1269 = vsub.s32 2, %v1268
    %v1270 = vrot.slane %v1253, %v1269
    %v1271 = vlaneseq
    %v1272 = vshrl.u32 %v1271, 7
    %v1273 = vsub.s32 3, %v1272
    %v1274 = vrot.slane %v1253, %v1273
    %v1343 = vunpack.c.l.b16 %v1189
    %v1344 = vunpack.c.h.b16 %v1189
    %v1345 = vunpack.c.l.b16 %v1190
    %v1346 = vunpack.c.h.b16 %v1190
    %v1347 = vunpack.c.l.b16 %v1191
    %v1348 = vunpack.c.h.b16 %v1191
    %v1349 = vunpack.c.l.b16 %v1192
    %v1350 = vunpack.c.h.b16 %v1192
    %v1351 = vunpack.c.l.b16 %v1193
    %v1352 = vunpack.c.h.b16 %v1193
    %v1353 = vunpack.c.l.b16 %v1194
    %v1354 = vunpack.c.h.b16 %v1194
    %v1355 = vunpack.c.l.b16 %v1195
    %v1356 = vunpack.c.h.b16 %v1195
    %v1357 = vunpack.c.l.b16 %v1196
    %v1358 = vunpack.c.h.b16 %v1196
    %v1359 = vunpack.c.l.b16 %v1197
    %v1360 = vunpack.c.h.b16 %v1197
    %v1361 = vunpack.c.l.b16 %v1198
    %v1362 = vunpack.c.h.b16 %v1198
    %v1363 = vunpack.c.l.b16 %v1199
    %v1364 = vunpack.c.h.b16 %v1199
    %v1365 = vunpack.c.l.b16 %v1200
    %v1366 = vunpack.c.h.b16 %v1200
    %v1367 = vunpack.c.l.b16 %v1201
    %v1368 = vunpack.c.h.b16 %v1201
    %v1369 = vunpack.c.l.b16 %v1202
    %v1370 = vunpack.c.h.b16 %v1202
    %v1371 = vunpack.c.l.b16 %v1203
    %v1372 = vunpack.c.h.b16 %v1203
    %v1373 = vunpack.c.l.b16 %v1204
    %v1374 = vunpack.c.h.b16 %v1204
    %v1375 = vunpack.c.l.b16 %v1205
    %v1376 = vunpack.c.h.b16 %v1205
    %v1377 = vunpack.c.l.b16 %v1206
    %v1378 = vunpack.c.h.b16 %v1206
    %v1379 = vunpack.c.l.b16 %v1207
    %v1380 = vunpack.c.h.b16 %v1207
    %v1381 = vunpack.c.l.b16 %v1208
    %v1382 = vunpack.c.h.b16 %v1208
    %v1383 = vunpack.c.l.b16 %v1209
    %v1384 = vunpack.c.h.b16 %v1209
    %v1385 = vunpack.c.l.b16 %v1210
    %v1386 = vunpack.c.h.b16 %v1210
    %v1387 = vunpack.c.l.b16 %v1211
    %v1388 = vunpack.c.h.b16 %v1211
    %v1389 = vunpack.c.l.b16 %v1212
    %v1390 = vunpack.c.h.b16 %v1212
    %v1391 = vunpack.c.l.b16 %v1213
    %v1392 = vunpack.c.h.b16 %v1213
    %v1393 = vunpack.c.l.b16 %v1214
    %v1394 = vunpack.c.h.b16 %v1214
    %v1395 = vunpack.c.l.b16 %v1215
    %v1396 = vunpack.c.h.b16 %v1215
    %v1397 = vunpack.c.l.b16 %v1216
    %v1398 = vunpack.c.h.b16 %v1216
    %v1399 = vunpack.c.l.b16 %v1217
    %v1400 = vunpack.c.h.b16 %v1217
    %v1401 = vunpack.c.l.b16 %v1218
    %v1402 = vunpack.c.h.b16 %v1218
    %v1403 = vunpack.c.l.b16 %v1219
    %v1404 = vunpack.c.h.b16 %v1219
    %v1405 = vunpack.c.l.b16 %v1220
    %v1406 = vunpack.c.h.b16 %v1220
    %v1407 = vunpack.c.l.b16 %v1221
    %v1408 = vunpack.c.h.b16 %v1221
    %v1409 = vunpack.c.l.b16 %v1222
    %v1410 = vunpack.c.h.b16 %v1222
    %v1411 = vunpack.c.l.b16 %v1223
    %v1412 = vunpack.c.h.b16 %v1223
    %v1413 = vunpack.c.l.b16 %v1224
    %v1414 = vunpack.c.h.b16 %v1224
    %v1415 = vunpack.c.l.b16 %v1225
    %v1416 = vunpack.c.h.b16 %v1225
    %v1417 = vunpack.c.l.b16 %v1226
    %v1418 = vunpack.c.h.b16 %v1226
    %v1419 = vunpack.c.l.b16 %v1227
    %v1420 = vunpack.c.h.b16 %v1227
    %v1421 = vunpack.c.l.b16 %v1228
    %v1422 = vunpack.c.h.b16 %v1228
    %v1423 = vunpack.c.l.b16 %v1229
    %v1424 = vunpack.c.h.b16 %v1229
    %v1425 = vunpack.c.l.b16 %v1230
    %v1426 = vunpack.c.h.b16 %v1230
    %v1427 = vunpack.c.l.b16 %v1231
    %v1428 = vunpack.c.h.b16 %v1231
    %v1429 = vunpack.c.l.b16 %v1232
    %v1430 = vunpack.c.h.b16 %v1232
    %v1431 = vunpack.c.l.b16 %v1233
    %v1432 = vunpack.c.h.b16 %v1233
    %v1433 = vunpack.c.l.b16 %v1234
    %v1434 = vunpack.c.h.b16 %v1234
    %v1435 = vunpack.c.l.b16 %v1235
    %v1436 = vunpack.c.h.b16 %v1235
    %v1437 = vunpack.c.l.b16 %v1236
    %v1438 = vunpack.c.h.b16 %v1236
    %v1439 = vunpack.c.l.b16 %v1237
    %v1440 = vunpack.c.h.b16 %v1237
    %v1441 = vunpack.c.l.b16 %v1238
    %v1442 = vunpack.c.h.b16 %v1238
    %v1443 = vunpack.c.l.b16 %v1239
    %v1444 = vunpack.c.h.b16 %v1239
    %v1445 = vunpack.c.l.b16 %v1240
    %v1446 = vunpack.c.h.b16 %v1240
    %v1447 = vunpack.c.l.b16 %v1241
    %v1448 = vunpack.c.h.b16 %v1241
    %v1449 = vunpack.c.l.b16 %v1242
    %v1450 = vunpack.c.h.b16 %v1242
    %v1451 = vunpack.c.l.b16 %v1243
    %v1452 = vunpack.c.h.b16 %v1243
    %v1453 = vunpack.c.l.b16 %v1244
    %v1454 = vunpack.c.h.b16 %v1244
    %v1455 = vunpack.c.l.b16 %v1245
    %v1456 = vunpack.c.h.b16 %v1245
    %v1457 = vunpack.c.l.b16 %v1246
    %v1458 = vunpack.c.h.b16 %v1246
    %v1459 = vunpack.c.l.b16 %v1247
    %v1460 = vunpack.c.h.b16 %v1247
    %v1461 = vunpack.c.l.b16 %v1248
    %v1462 = vunpack.c.h.b16 %v1248
    %v1463 = vunpack.c.l.b16 %v1249
    %v1464 = vunpack.c.h.b16 %v1249
    %v1465 = vunpack.c.l.b16 %v1250
    %v1466 = vunpack.c.h.b16 %v1250
    %v1467 = vunpack.c.l.b16 %v1251
    %v1468 = vunpack.c.h.b16 %v1251
    %v1469 = vunpack.c.l.b16 %v1252
    %v1470 = vunpack.c.h.b16 %v1252
    %v1471 = vpack.c.b16 %v1347, %v1343
    %v1472 = vpack.c.b16 %v1348, %v1344
    %v1473 = vpack.c.b16 %v1349, %v1345
    %v1474 = vpack.c.b16 %v1350, %v1346
    %v1475 = vpack.c.b16 %v1355, %v1351
    %v1476 = vpack.c.b16 %v1356, %v1352
    %v1477 = vpack.c.b16 %v1357, %v1353
    %v1478 = vpack.c.b16 %v1358, %v1354
    %v1479 = vpack.c.b16 %v1363, %v1359
    %v1480 = vpack.c.b16 %v1364, %v1360
    %v1481 = vpack.c.b16 %v1365, %v1361
    %v1482 = vpack.c.b16 %v1366, %v1362
    %v1483 = vpack.c.b16 %v1371, %v1367
    %v1484 = vpack.c.b16 %v1372, %v1368
    %v1485 = vpack.c.b16 %v1373, %v1369
    %v1486 = vpack.c.b16 %v1374, %v1370
    %v1487 = vpack.c.b16 %v1379, %v1375
    %v1488 = vpack.c.b16 %v1380, %v1376
    %v1489 = vpack.c.b16 %v1381, %v1377
    %v1490 = vpack.c.b16 %v1382, %v1378
    %v1491 = vpack.c.b16 %v1387, %v1383
    %v1492 = vpack.c.b16 %v1388, %v1384
    %v1493 = vpack.c.b16 %v1389, %v1385
    %v1494 = vpack.c.b16 %v1390, %v1386
    %v1495 = vpack.c.b16 %v1395, %v1391
    %v1496 = vpack.c.b16 %v1396, %v1392
    %v1497 = vpack.c.b16 %v1397, %v1393
    %v1498 = vpack.c.b16 %v1398, %v1394
    %v1499 = vpack.c.b16 %v1403, %v1399
    %v1500 = vpack.c.b16 %v1404, %v1400
    %v1501 = vpack.c.b16 %v1405, %v1401
    %v1502 = vpack.c.b16 %v1406, %v1402
    %v1503 = vpack.c.b16 %v1411, %v1407
    %v1504 = vpack.c.b16 %v1412, %v1408
    %v1505 = vpack.c.b16 %v1413, %v1409
    %v1506 = vpack.c.b16 %v1414, %v1410
    %v1507 = vpack.c.b16 %v1419, %v1415
    %v1508 = vpack.c.b16 %v1420, %v1416
    %v1509 = vpack.c.b16 %v1421, %v1417
    %v1510 = vpack.c.b16 %v1422, %v1418
    %v1511 = vpack.c.b16 %v1427, %v1423
    %v1512 = vpack.c.b16 %v1428, %v1424
    %v1513 = vpack.c.b16 %v1429, %v1425
    %v1514 = vpack.c.b16 %v1430, %v1426
    %v1515 = vpack.c.b16 %v1435, %v1431
    %v1516 = vpack.c.b16 %v1436, %v1432
    %v1517 = vpack.c.b16 %v1437, %v1433
    %v1518 = vpack.c.b16 %v1438, %v1434
    %v1519 = vpack.c.b16 %v1443, %v1439
    %v1520 = vpack.c.b16 %v1444, %v1440
    %v1521 = vpack.c.b16 %v1445, %v1441
    %v1522 = vpack.c.b16 %v1446, %v1442
    %v1523 = vpack.c.b16 %v1451, %v1447
    %v1524 = vpack.c.b16 %v1452, %v1448
    %v1525 = vpack.c.b16 %v1453, %v1449
    %v1526 = vpack.c.b16 %v1454, %v1450
    %v1527 = vpack.c.b16 %v1459, %v1455
    %v1528 = vpack.c.b16 %v1460, %v1456
    %v1529 = vpack.c.b16 %v1461, %v1457
    %v1530 = vpack.c.b16 %v1462, %v1458
    %v1531 = vpack.c.b16 %v1467, %v1463
    %v1532 = vpack.c.b16 %v1468, %v1464
    %v1533 = vpack.c.b16 %v1469, %v1465
    %v1534 = vpack.c.b16 %v1470, %v1466
    %1599 = vmatprep.subr.bf16.mxu0 %v1472
    %1600 = vmatpush1.bf16.msra.mxu0 %v1471
    %1601 = vmatprep.subr.bf16.mxu0 %v1476
    %1602 = vmatpush1.bf16.msra.mxu0 %v1475
    %1603 = vmatprep.subr.bf16.mxu0 %v1480
    %1604 = vmatpush1.bf16.msra.mxu0 %v1479
    %1605 = vmatprep.subr.bf16.mxu0 %v1484
    %1606 = vmatpush1.bf16.msra.mxu0 %v1483
    %1607 = vmatprep.subr.bf16.mxu0 %v1488
    %1608 = vmatpush1.bf16.msra.mxu0 %v1487
    %1609 = vmatprep.subr.bf16.mxu0 %v1492
    %1610 = vmatpush1.bf16.msra.mxu0 %v1491
    %1611 = vmatprep.subr.bf16.mxu0 %v1496
    %1612 = vmatpush1.bf16.msra.mxu0 %v1495
    %1613 = vmatprep.subr.bf16.mxu0 %v1500
    %1614 = vmatpush1.bf16.msra.mxu0 %v1499
    %1615 = vmatprep.subr.bf16.mxu0 %v1504
    %1616 = vmatpush1.bf16.msra.mxu0 %v1503
    %1617 = vmatprep.subr.bf16.mxu0 %v1508
    %1618 = vmatpush1.bf16.msra.mxu0 %v1507
    %1619 = vmatprep.subr.bf16.mxu0 %v1512
    %1620 = vmatpush1.bf16.msra.mxu0 %v1511
    %1621 = vmatprep.subr.bf16.mxu0 %v1516
    %1622 = vmatpush1.bf16.msra.mxu0 %v1515
    %1623 = vmatprep.subr.bf16.mxu0 %v1520
    %1624 = vmatpush1.bf16.msra.mxu0 %v1519
    %1625 = vmatprep.subr.bf16.mxu0 %v1524
    %1626 = vmatpush1.bf16.msra.mxu0 %v1523
    %1627 = vmatprep.subr.bf16.mxu0 %v1528
    %1628 = vmatpush1.bf16.msra.mxu0 %v1527
    %1629 = vmatprep.subr.bf16.mxu0 %v1532
    %1630 = vmatpush1.bf16.msra.mxu0 %v1531
    %1631 = vmatprep.mubr.bf16.mxu0 %v1257
    %1632 = vmatmul.mubr.bf16.gmra.mrb[0].mxu0 %v1256
    %v1633 = vpop.f32.mrb[0].mxu0
    %v1634 = vadd.f32 %v1262, %v1633
    %v1635 = vpop.f32.mrb[0].mxu0
    %v1636 = vadd.f32 %v1266, %v1635
    %v1637 = vpop.f32.mrb[0].mxu0
    %v1638 = vpop.f32.mrb[0].mxu0
    %1639 = vdwg.mxu0
    %1640 = vmatprep.subr.bf16.mxu0 %v1474
    %1641 = vmatpush1.bf16.msra.mxu0 %v1473
    %1642 = vmatprep.subr.bf16.mxu0 %v1478
    %1643 = vmatpush1.bf16.msra.mxu0 %v1477
    %1644 = vmatprep.subr.bf16.mxu0 %v1482
    %1645 = vmatpush1.bf16.msra.mxu0 %v1481
    %1646 = vmatprep.subr.bf16.mxu0 %v1486
    %1647 = vmatpush1.bf16.msra.mxu0 %v1485
    %1648 = vmatprep.subr.bf16.mxu0 %v1490
    %1649 = vmatpush1.bf16.msra.mxu0 %v1489
    %1650 = vmatprep.subr.bf16.mxu0 %v1494
    %1651 = vmatpush1.bf16.msra.mxu0 %v1493
    %1652 = vmatprep.subr.bf16.mxu0 %v1498
    %1653 = vmatpush1.bf16.msra.mxu0 %v1497
    %1654 = vmatprep.subr.bf16.mxu0 %v1502
    %1655 = vmatpush1.bf16.msra.mxu0 %v1501
    %1656 = vmatprep.subr.bf16.mxu0 %v1506
    %1657 = vmatpush1.bf16.msra.mxu0 %v1505
    %1658 = vmatprep.subr.bf16.mxu0 %v1510
    %1659 = vmatpush1.bf16.msra.mxu0 %v1509
    %1660 = vmatprep.subr.bf16.mxu0 %v1514
    %1661 = vmatpush1.bf16.msra.mxu0 %v1513
    %1662 = vmatprep.subr.bf16.mxu0 %v1518
    %1663 = vmatpush1.bf16.msra.mxu0 %v1517
    %1664 = vmatprep.subr.bf16.mxu0 %v1522
    %1665 = vmatpush1.bf16.msra.mxu0 %v1521
    %1666 = vmatprep.subr.bf16.mxu0 %v1526
    %1667 = vmatpush1.bf16.msra.mxu0 %v1525
    %1668 = vmatprep.subr.bf16.mxu0 %v1530
    %1669 = vmatpush1.bf16.msra.mxu0 %v1529
    %1670 = vmatprep.subr.bf16.mxu0 %v1534
    %1671 = vmatpush1.bf16.msra.mxu0 %v1533
    %1672 = vmatprep.mubr.bf16.mxu0 %v1257
    %1673 = vmatmul.mubr.bf16.gmra.mrb[0].mxu0 %v1256
    %v1674 = vpop.f32.mrb[0].mxu0
    %v1675 = vadd.f32 %v1270, %v1674
    %v1676 = vpop.f32.mrb[0].mxu0
    %v1677 = vadd.f32 %v1274, %v1676
    %v1678 = vpop.f32.mrb[0].mxu0
    %v1679 = vpop.f32.mrb[0].mxu0
    %1680 = vdwg.mxu0
    %v1681 = vld [vmem:[#allocation28] sm:$0xff]
    %v1682 = vld [vmem:[#allocation28 + $0x8] sm:$0xff]
    %v1683 = vld [vmem:[#allocation28 + $0x10] sm:$0xff]
    %v1684 = vld [vmem:[#allocation28 + $0x18] sm:$0xff]
    %v1685 = vld [vmem:[#allocation28 + $0x20] sm:$0xff]
    %v1686 = vld [vmem:[#allocation28 + $0x28] sm:$0xff]
    %v1687 = vld [vmem:[#allocation28 + $0x30] sm:$0xff]
    %v1688 = vld [vmem:[#allocation28 + $0x38] sm:$0xff]
    %v1689 = vld [vmem:[#allocation28 + $0x40] sm:$0xff]
    %v1690 = vld [vmem:[#allocation28 + $0x48] sm:$0xff]
    %v1691 = vld [vmem:[#allocation28 + $0x50] sm:$0xff]
    %v1692 = vld [vmem:[#allocation28 + $0x58] sm:$0xff]
    %v1693 = vld [vmem:[#allocation28 + $0x60] sm:$0xff]
    %v1694 = vld [vmem:[#allocation28 + $0x68] sm:$0xff]
    %v1695 = vld [vmem:[#allocation28 + $0x70] sm:$0xff]
    %v1696 = vld [vmem:[#allocation28 + $0x78] sm:$0xff]
    %v1697 = vld [vmem:[#allocation28 + $0x80] sm:$0xff]
    %v1698 = vld [vmem:[#allocation28 + $0x88] sm:$0xff]
    %v1699 = vld [vmem:[#allocation28 + $0x90] sm:$0xff]
    %v1700 = vld [vmem:[#allocation28 + $0x98] sm:$0xff]
    %v1701 = vld [vmem:[#allocation28 + $0xa0] sm:$0xff]
    %v1702 = vld [vmem:[#allocation28 + $0xa8] sm:$0xff]
    %v1703 = vld [vmem:[#allocation28 + $0xb0] sm:$0xff]
    %v1704 = vld [vmem:[#allocation28 + $0xb8] sm:$0xff]
    %v1705 = vld [vmem:[#allocation28 + $0xc0] sm:$0xff]
    %v1706 = vld [vmem:[#allocation28 + $0xc8] sm:$0xff]
    %v1707 = vld [vmem:[#allocation28 + $0xd0] sm:$0xff]
    %v1708 = vld [vmem:[#allocation28 + $0xd8] sm:$0xff]
    %v1709 = vld [vmem:[#allocation28 + $0xe0] sm:$0xff]
    %v1710 = vld [vmem:[#allocation28 + $0xe8] sm:$0xff]
    %v1711 = vld [vmem:[#allocation28 + $0xf0] sm:$0xff]
    %v1712 = vld [vmem:[#allocation28 + $0xf8] sm:$0xff]
    %v1713 = vld [vmem:[#allocation28 + $0x100] sm:$0xff]
    %v1714 = vld [vmem:[#allocation28 + $0x108] sm:$0xff]
    %v1715 = vld [vmem:[#allocation28 + $0x110] sm:$0xff]
    %v1716 = vld [vmem:[#allocation28 + $0x118] sm:$0xff]
    %v1717 = vld [vmem:[#allocation28 + $0x120] sm:$0xff]
    %v1718 = vld [vmem:[#allocation28 + $0x128] sm:$0xff]
    %v1719 = vld [vmem:[#allocation28 + $0x130] sm:$0xff]
    %v1720 = vld [vmem:[#allocation28 + $0x138] sm:$0xff]
    %v1721 = vld [vmem:[#allocation28 + $0x140] sm:$0xff]
    %v1722 = vld [vmem:[#allocation28 + $0x148] sm:$0xff]
    %v1723 = vld [vmem:[#allocation28 + $0x150] sm:$0xff]
    %v1724 = vld [vmem:[#allocation28 + $0x158] sm:$0xff]
    %v1725 = vld [vmem:[#allocation28 + $0x160] sm:$0xff]
    %v1726 = vld [vmem:[#allocation28 + $0x168] sm:$0xff]
    %v1727 = vld [vmem:[#allocation28 + $0x170] sm:$0xff]
    %v1728 = vld [vmem:[#allocation28 + $0x178] sm:$0xff]
    %v1729 = vld [vmem:[#allocation28 + $0x180] sm:$0xff]
    %v1730 = vld [vmem:[#allocation28 + $0x188] sm:$0xff]
    %v1731 = vld [vmem:[#allocation28 + $0x190] sm:$0xff]
    %v1732 = vld [vmem:[#allocation28 + $0x198] sm:$0xff]
    %v1733 = vld [vmem:[#allocation28 + $0x1a0] sm:$0xff]
    %v1734 = vld [vmem:[#allocation28 + $0x1a8] sm:$0xff]
    %v1735 = vld [vmem:[#allocation28 + $0x1b0] sm:$0xff]
    %v1736 = vld [vmem:[#allocation28 + $0x1b8] sm:$0xff]
    %v1737 = vld [vmem:[#allocation28 + $0x1c0] sm:$0xff]
    %v1738 = vld [vmem:[#allocation28 + $0x1c8] sm:$0xff]
    %v1739 = vld [vmem:[#allocation28 + $0x1d0] sm:$0xff]
    %v1740 = vld [vmem:[#allocation28 + $0x1d8] sm:$0xff]
    %v1741 = vld [vmem:[#allocation28 + $0x1e0] sm:$0xff]
    %v1742 = vld [vmem:[#allocation28 + $0x1e8] sm:$0xff]
    %v1743 = vld [vmem:[#allocation28 + $0x1f0] sm:$0xff]
    %v1744 = vld [vmem:[#allocation28 + $0x1f8] sm:$0xff]
    %v1745 = vld [vmem:[%s18] sm:$0x3]
    %v1746 = vmax.f32 %v1634, 0.0
    %v1747 = vmax.f32 %v1636, 0.0
    %v1748 = vmax.f32 %v1675, 0.0
    %v1749 = vmax.f32 %v1677, 0.0
    %v1750 = vpack.c.bf16 %v1746, %v1746
    %v1751 = vpack.c.bf16 %v1747, %v1747
    %v1752 = vpack.c.bf16 %v1748, %v1748
    %v1753 = vpack.c.bf16 %v1749, %v1749
    %v1755 = vlaneseq
    %v1756 = vshrl.u32 %v1755, 7
    %v1757 = vsub.s32 0, %v1756
    %v1758 = vrot.slane %v1745, %v1757
    %v1759 = vlaneseq
    %v1760 = vshrl.u32 %v1759, 7
    %v1761 = vsub.s32 1, %v1760
    %v1762 = vrot.slane %v1745, %v1761
    %v1829 = vunpack.c.l.b16 %v1681
    %v1830 = vunpack.c.h.b16 %v1681
    %v1831 = vunpack.c.l.b16 %v1682
    %v1832 = vunpack.c.h.b16 %v1682
    %v1833 = vunpack.c.l.b16 %v1683
    %v1834 = vunpack.c.h.b16 %v1683
    %v1835 = vunpack.c.l.b16 %v1684
    %v1836 = vunpack.c.h.b16 %v1684
    %v1837 = vunpack.c.l.b16 %v1685
    %v1838 = vunpack.c.h.b16 %v1685
    %v1839 = vunpack.c.l.b16 %v1686
    %v1840 = vunpack.c.h.b16 %v1686
    %v1841 = vunpack.c.l.b16 %v1687
    %v1842 = vunpack.c.h.b16 %v1687
    %v1843 = vunpack.c.l.b16 %v1688
    %v1844 = vunpack.c.h.b16 %v1688
    %v1845 = vunpack.c.l.b16 %v1689
    %v1846 = vunpack.c.h.b16 %v1689
    %v1847 = vunpack.c.l.b16 %v1690
    %v1848 = vunpack.c.h.b16 %v1690
    %v1849 = vunpack.c.l.b16 %v1691
    %v1850 = vunpack.c.h.b16 %v1691
    %v1851 = vunpack.c.l.b16 %v1692
    %v1852 = vunpack.c.h.b16 %v1692
    %v1853 = vunpack.c.l.b16 %v1693
    %v1854 = vunpack.c.h.b16 %v1693
    %v1855 = vunpack.c.l.b16 %v1694
    %v1856 = vunpack.c.h.b16 %v1694
    %v1857 = vunpack.c.l.b16 %v1695
    %v1858 = vunpack.c.h.b16 %v1695
    %v1859 = vunpack.c.l.b16 %v1696
    %v1860 = vunpack.c.h.b16 %v1696
    %v1861 = vunpack.c.l.b16 %v1697
    %v1862 = vunpack.c.h.b16 %v1697
    %v1863 = vunpack.c.l.b16 %v1698
    %v1864 = vunpack.c.h.b16 %v1698
    %v1865 = vunpack.c.l.b16 %v1699
    %v1866 = vunpack.c.h.b16 %v1699
    %v1867 = vunpack.c.l.b16 %v1700
    %v1868 = vunpack.c.h.b16 %v1700
    %v1869 = vunpack.c.l.b16 %v1701
    %v1870 = vunpack.c.h.b16 %v1701
    %v1871 = vunpack.c.l.b16 %v1702
    %v1872 = vunpack.c.h.b16 %v1702
    %v1873 = vunpack.c.l.b16 %v1703
    %v1874 = vunpack.c.h.b16 %v1703
    %v1875 = vunpack.c.l.b16 %v1704
    %v1876 = vunpack.c.h.b16 %v1704
    %v1877 = vunpack.c.l.b16 %v1705
    %v1878 = vunpack.c.h.b16 %v1705
    %v1879 = vunpack.c.l.b16 %v1706
    %v1880 = vunpack.c.h.b16 %v1706
    %v1881 = vunpack.c.l.b16 %v1707
    %v1882 = vunpack.c.h.b16 %v1707
    %v1883 = vunpack.c.l.b16 %v1708
    %v1884 = vunpack.c.h.b16 %v1708
    %v1885 = vunpack.c.l.b16 %v1709
    %v1886 = vunpack.c.h.b16 %v1709
    %v1887 = vunpack.c.l.b16 %v1710
    %v1888 = vunpack.c.h.b16 %v1710
    %v1889 = vunpack.c.l.b16 %v1711
    %v1890 = vunpack.c.h.b16 %v1711
    %v1891 = vunpack.c.l.b16 %v1712
    %v1892 = vunpack.c.h.b16 %v1712
    %v1893 = vunpack.c.l.b16 %v1713
    %v1894 = vunpack.c.h.b16 %v1713
    %v1895 = vunpack.c.l.b16 %v1714
    %v1896 = vunpack.c.h.b16 %v1714
    %v1897 = vunpack.c.l.b16 %v1715
    %v1898 = vunpack.c.h.b16 %v1715
    %v1899 = vunpack.c.l.b16 %v1716
    %v1900 = vunpack.c.h.b16 %v1716
    %v1901 = vunpack.c.l.b16 %v1717
    %v1902 = vunpack.c.h.b16 %v1717
    %v1903 = vunpack.c.l.b16 %v1718
    %v1904 = vunpack.c.h.b16 %v1718
    %v1905 = vunpack.c.l.b16 %v1719
    %v1906 = vunpack.c.h.b16 %v1719
    %v1907 = vunpack.c.l.b16 %v1720
    %v1908 = vunpack.c.h.b16 %v1720
    %v1909 = vunpack.c.l.b16 %v1721
    %v1910 = vunpack.c.h.b16 %v1721
    %v1911 = vunpack.c.l.b16 %v1722
    %v1912 = vunpack.c.h.b16 %v1722
    %v1913 = vunpack.c.l.b16 %v1723
    %v1914 = vunpack.c.h.b16 %v1723
    %v1915 = vunpack.c.l.b16 %v1724
    %v1916 = vunpack.c.h.b16 %v1724
    %v1917 = vunpack.c.l.b16 %v1725
    %v1918 = vunpack.c.h.b16 %v1725
    %v1919 = vunpack.c.l.b16 %v1726
    %v1920 = vunpack.c.h.b16 %v1726
    %v1921 = vunpack.c.l.b16 %v1727
    %v1922 = vunpack.c.h.b16 %v1727
    %v1923 = vunpack.c.l.b16 %v1728
    %v1924 = vunpack.c.h.b16 %v1728
    %v1925 = vunpack.c.l.b16 %v1729
    %v1926 = vunpack.c.h.b16 %v1729
    %v1927 = vunpack.c.l.b16 %v1730
    %v1928 = vunpack.c.h.b16 %v1730
    %v1929 = vunpack.c.l.b16 %v1731
    %v1930 = vunpack.c.h.b16 %v1731
    %v1931 = vunpack.c.l.b16 %v1732
    %v1932 = vunpack.c.h.b16 %v1732
    %v1933 = vunpack.c.l.b16 %v1733
    %v1934 = vunpack.c.h.b16 %v1733
    %v1935 = vunpack.c.l.b16 %v1734
    %v1936 = vunpack.c.h.b16 %v1734
    %v1937 = vunpack.c.l.b16 %v1735
    %v1938 = vunpack.c.h.b16 %v1735
    %v1939 = vunpack.c.l.b16 %v1736
    %v1940 = vunpack.c.h.b16 %v1736
    %v1941 = vunpack.c.l.b16 %v1737
    %v1942 = vunpack.c.h.b16 %v1737
    %v1943 = vunpack.c.l.b16 %v1738
    %v1944 = vunpack.c.h.b16 %v1738
    %v1945 = vunpack.c.l.b16 %v1739
    %v1946 = vunpack.c.h.b16 %v1739
    %v1947 = vunpack.c.l.b16 %v1740
    %v1948 = vunpack.c.h.b16 %v1740
    %v1949 = vunpack.c.l.b16 %v1741
    %v1950 = vunpack.c.h.b16 %v1741
    %v1951 = vunpack.c.l.b16 %v1742
    %v1952 = vunpack.c.h.b16 %v1742
    %v1953 = vunpack.c.l.b16 %v1743
    %v1954 = vunpack.c.h.b16 %v1743
    %v1955 = vunpack.c.l.b16 %v1744
    %v1956 = vunpack.c.h.b16 %v1744
    %v1957 = vpack.c.b16 %v1831, %v1829
    %v1958 = vpack.c.b16 %v1832, %v1830
    %v1959 = vpack.c.b16 %v1835, %v1833
    %v1960 = vpack.c.b16 %v1836, %v1834
    %v1961 = vpack.c.b16 %v1839, %v1837
    %v1962 = vpack.c.b16 %v1840, %v1838
    %v1963 = vpack.c.b16 %v1843, %v1841
    %v1964 = vpack.c.b16 %v1844, %v1842
    %v1965 = vpack.c.b16 %v1847, %v1845
    %v1966 = vpack.c.b16 %v1848, %v1846
    %v1967 = vpack.c.b16 %v1851, %v1849
    %v1968 = vpack.c.b16 %v1852, %v1850
    %v1969 = vpack.c.b16 %v1855, %v1853
    %v1970 = vpack.c.b16 %v1856, %v1854
    %v1971 = vpack.c.b16 %v1859, %v1857
    %v1972 = vpack.c.b16 %v1860, %v1858
    %v1973 = vpack.c.b16 %v1863, %v1861
    %v1974 = vpack.c.b16 %v1864, %v1862
    %v1975 = vpack.c.b16 %v1867, %v1865
    %v1976 = vpack.c.b16 %v1868, %v1866
    %v1977 = vpack.c.b16 %v1871, %v1869
    %v1978 = vpack.c.b16 %v1872, %v1870
    %v1979 = vpack.c.b16 %v1875, %v1873
    %v1980 = vpack.c.b16 %v1876, %v1874
    %v1981 = vpack.c.b16 %v1879, %v1877
    %v1982 = vpack.c.b16 %v1880, %v1878
    %v1983 = vpack.c.b16 %v1883, %v1881
    %v1984 = vpack.c.b16 %v1884, %v1882
    %v1985 = vpack.c.b16 %v1887, %v1885
    %v1986 = vpack.c.b16 %v1888, %v1886
    %v1987 = vpack.c.b16 %v1891, %v1889
    %v1988 = vpack.c.b16 %v1892, %v1890
    %v1989 = vpack.c.b16 %v1895, %v1893
    %v1990 = vpack.c.b16 %v1896, %v1894
    %v1991 = vpack.c.b16 %v1899, %v1897
    %v1992 = vpack.c.b16 %v1900, %v1898
    %v1993 = vpack.c.b16 %v1903, %v1901
    %v1994 = vpack.c.b16 %v1904, %v1902
    %v1995 = vpack.c.b16 %v1907, %v1905
    %v1996 = vpack.c.b16 %v1908, %v1906
    %v1997 = vpack.c.b16 %v1911, %v1909
    %v1998 = vpack.c.b16 %v1912, %v1910
    %v1999 = vpack.c.b16 %v1915, %v1913
    %v2000 = vpack.c.b16 %v1916, %v1914
    %v2001 = vpack.c.b16 %v1919, %v1917
    %v2002 = vpack.c.b16 %v1920, %v1918
    %v2003 = vpack.c.b16 %v1923, %v1921
    %v2004 = vpack.c.b16 %v1924, %v1922
    %v2005 = vpack.c.b16 %v1927, %v1925
    %v2006 = vpack.c.b16 %v1928, %v1926
    %v2007 = vpack.c.b16 %v1931, %v1929
    %v2008 = vpack.c.b16 %v1932, %v1930
    %v2009 = vpack.c.b16 %v1935, %v1933
    %v2010 = vpack.c.b16 %v1936, %v1934
    %v2011 = vpack.c.b16 %v1939, %v1937
    %v2012 = vpack.c.b16 %v1940, %v1938
    %v2013 = vpack.c.b16 %v1943, %v1941
    %v2014 = vpack.c.b16 %v1944, %v1942
    %v2015 = vpack.c.b16 %v1947, %v1945
    %v2016 = vpack.c.b16 %v1948, %v1946
    %v2017 = vpack.c.b16 %v1951, %v1949
    %v2018 = vpack.c.b16 %v1952, %v1950
    %v2019 = vpack.c.b16 %v1955, %v1953
    %v2020 = vpack.c.b16 %v1956, %v1954
    %2085 = vmatprep.subr.bf16.mxu0 %v1958
    %2086 = vmatpush1.bf16.msra.mxu0 %v1957
    %2087 = vmatprep.subr.bf16.mxu0 %v1960
    %2088 = vmatpush1.bf16.msra.mxu0 %v1959
    %2089 = vmatprep.subr.bf16.mxu0 %v1962
    %2090 = vmatpush1.bf16.msra.mxu0 %v1961
    %2091 = vmatprep.subr.bf16.mxu0 %v1964
    %2092 = vmatpush1.bf16.msra.mxu0 %v1963
    %2093 = vmatprep.subr.bf16.mxu0 %v1966
    %2094 = vmatpush1.bf16.msra.mxu0 %v1965
    %2095 = vmatprep.subr.bf16.mxu0 %v1968
    %2096 = vmatpush1.bf16.msra.mxu0 %v1967
    %2097 = vmatprep.subr.bf16.mxu0 %v1970
    %2098 = vmatpush1.bf16.msra.mxu0 %v1969
    %2099 = vmatprep.subr.bf16.mxu0 %v1972
    %2100 = vmatpush1.bf16.msra.mxu0 %v1971
    %2101 = vmatprep.subr.bf16.mxu0 %v1974
    %2102 = vmatpush1.bf16.msra.mxu0 %v1973
    %2103 = vmatprep.subr.bf16.mxu0 %v1976
    %2104 = vmatpush1.bf16.msra.mxu0 %v1975
    %2105 = vmatprep.subr.bf16.mxu0 %v1978
    %2106 = vmatpush1.bf16.msra.mxu0 %v1977
    %2107 = vmatprep.subr.bf16.mxu0 %v1980
    %2108 = vmatpush1.bf16.msra.mxu0 %v1979
    %2109 = vmatprep.subr.bf16.mxu0 %v1982
    %2110 = vmatpush1.bf16.msra.mxu0 %v1981
    %2111 = vmatprep.subr.bf16.mxu0 %v1984
    %2112 = vmatpush1.bf16.msra.mxu0 %v1983
    %2113 = vmatprep.subr.bf16.mxu0 %v1986
    %2114 = vmatpush1.bf16.msra.mxu0 %v1985
    %2115 = vmatprep.subr.bf16.mxu0 %v1988
    %2116 = vmatpush1.bf16.msra.mxu0 %v1987
    %2117 = vmatprep.mubr.bf16.mxu0 %v1751
    %2118 = vmatmul.mubr.bf16.gmra.mrb[0].mxu0 %v1750
    %v2119 = vpop.f32.mrb[0].mxu0
    %v2120 = vadd.f32 %v1758, %v2119
    %v2121 = vpop.f32.mrb[0].mxu0
    %v2122 = vadd.f32 %v1762, %v2121
    %v2123 = vpop.f32.mrb[0].mxu0
    %v2124 = vpop.f32.mrb[0].mxu0
    %2125 = vdwg.mxu0
    %2126 = vmatprep.subr.bf16.mxu0 %v1990
    %2127 = vmatpush1.bf16.msra.mxu0 %v1989
    %2128 = vmatprep.subr.bf16.mxu0 %v1992
    %2129 = vmatpush1.bf16.msra.mxu0 %v1991
    %2130 = vmatprep.subr.bf16.mxu0 %v1994
    %2131 = vmatpush1.bf16.msra.mxu0 %v1993
    %2132 = vmatprep.subr.bf16.mxu0 %v1996
    %2133 = vmatpush1.bf16.msra.mxu0 %v1995
    %2134 = vmatprep.subr.bf16.mxu0 %v1998
    %2135 = vmatpush1.bf16.msra.mxu0 %v1997
    %2136 = vmatprep.subr.bf16.mxu0 %v2000
    %2137 = vmatpush1.bf16.msra.mxu0 %v1999
    %2138 = vmatprep.subr.bf16.mxu0 %v2002
    %2139 = vmatpush1.bf16.msra.mxu0 %v2001
    %2140 = vmatprep.subr.bf16.mxu0 %v2004
    %2141 = vmatpush1.bf16.msra.mxu0 %v2003
    %2142 = vmatprep.subr.bf16.mxu0 %v2006
    %2143 = vmatpush1.bf16.msra.mxu0 %v2005
    %2144 = vmatprep.subr.bf16.mxu0 %v2008
    %2145 = vmatpush1.bf16.msra.mxu0 %v2007
    %2146 = vmatprep.subr.bf16.mxu0 %v2010
    %2147 = vmatpush1.bf16.msra.mxu0 %v2009
    %2148 = vmatprep.subr.bf16.mxu0 %v2012
    %2149 = vmatpush1.bf16.msra.mxu0 %v2011
    %2150 = vmatprep.subr.bf16.mxu0 %v2014
    %2151 = vmatpush1.bf16.msra.mxu0 %v2013
    %2152 = vmatprep.subr.bf16.mxu0 %v2016
    %2153 = vmatpush1.bf16.msra.mxu0 %v2015
    %2154 = vmatprep.subr.bf16.mxu0 %v2018
    %2155 = vmatpush1.bf16.msra.mxu0 %v2017
    %2156 = vmatprep.subr.bf16.mxu0 %v2020
    %2157 = vmatpush1.bf16.msra.mxu0 %v2019
    %2158 = vmatprep.mubr.bf16.mxu0 %v1753
    %2159 = vmatmul.mubr.bf16.gmra.mrb[0].mxu0 %v1752
    %v2160 = vpop.f32.mrb[0].mxu0
    %v2161 = vadd.f32 %v2120, %v2160
    %v2162 = vpop.f32.mrb[0].mxu0
    %v2163 = vadd.f32 %v2122, %v2162
    %v2164 = vpop.f32.mrb[0].mxu0
    %v2165 = vpop.f32.mrb[0].mxu0
    %2166 = vdwg.mxu0
    %v2167 = vld [vmem:[#allocation29] sm:$0xf]
    %v2168 = vld [vmem:[#allocation29 + $0x4] sm:$0xf]
    %v2169 = vld [vmem:[#allocation29 + $0x8] sm:$0xf]
    %v2170 = vld [vmem:[#allocation29 + $0xc] sm:$0xf]
    %v2171 = vld [vmem:[#allocation29 + $0x10] sm:$0xf]
    %v2172 = vld [vmem:[#allocation29 + $0x14] sm:$0xf]
    %v2173 = vld [vmem:[#allocation29 + $0x18] sm:$0xf]
    %v2174 = vld [vmem:[#allocation29 + $0x1c] sm:$0xf]
    %v2175 = vld [vmem:[#allocation29 + $0x20] sm:$0xf]
    %v2176 = vld [vmem:[#allocation29 + $0x24] sm:$0xf]
    %v2177 = vld [vmem:[#allocation29 + $0x28] sm:$0xf]
    %v2178 = vld [vmem:[#allocation29 + $0x2c] sm:$0xf]
    %v2179 = vld [vmem:[#allocation29 + $0x30] sm:$0xf]
    %v2180 = vld [vmem:[#allocation29 + $0x34] sm:$0xf]
    %v2181 = vld [vmem:[#allocation29 + $0x38] sm:$0xf]
    %v2182 = vld [vmem:[#allocation29 + $0x3c] sm:$0xf]
    %v2183 = vld [vmem:[#allocation29 + $0x40] sm:$0xf]
    %v2184 = vld [vmem:[#allocation29 + $0x44] sm:$0xf]
    %v2185 = vld [vmem:[#allocation29 + $0x48] sm:$0xf]
    %v2186 = vld [vmem:[#allocation29 + $0x4c] sm:$0xf]
    %v2187 = vld [vmem:[#allocation29 + $0x50] sm:$0xf]
    %v2188 = vld [vmem:[#allocation29 + $0x54] sm:$0xf]
    %v2189 = vld [vmem:[#allocation29 + $0x58] sm:$0xf]
    %v2190 = vld [vmem:[#allocation29 + $0x5c] sm:$0xf]
    %v2191 = vld [vmem:[#allocation29 + $0x60] sm:$0xf]
    %v2192 = vld [vmem:[#allocation29 + $0x64] sm:$0xf]
    %v2193 = vld [vmem:[#allocation29 + $0x68] sm:$0xf]
    %v2194 = vld [vmem:[#allocation29 + $0x6c] sm:$0xf]
    %v2195 = vld [vmem:[#allocation29 + $0x70] sm:$0xf]
    %v2196 = vld [vmem:[#allocation29 + $0x74] sm:$0xf]
    %v2197 = vld [vmem:[#allocation29 + $0x78] sm:$0xf]
    %v2198 = vld [vmem:[#allocation29 + $0x7c] sm:$0xf]
    %v2199 = vld [vmem:[%s20] sm:$0x1]
    %v2200 = vmax.f32 %v2161, 0.0
    %v2201 = vmax.f32 %v2163, 0.0
    %v2202 = vpack.c.bf16 %v2200, %v2200
    %v2203 = vpack.c.bf16 %v2201, %v2201
    %v2205 = vlaneseq
    %v2206 = vshrl.u32 %v2205, 7
    %v2207 = vsub.s32 0, %v2206
    %v2208 = vrot.slane %v2199, %v2207
    %v2242 = vunpack.c.l.b16 %v2167
    %v2243 = vunpack.c.l.b16 %v2168
    %v2244 = vunpack.c.l.b16 %v2169
    %v2245 = vunpack.c.l.b16 %v2170
    %v2246 = vunpack.c.l.b16 %v2171
    %v2247 = vunpack.c.l.b16 %v2172
    %v2248 = vunpack.c.l.b16 %v2173
    %v2249 = vunpack.c.l.b16 %v2174
    %v2250 = vunpack.c.l.b16 %v2175
    %v2251 = vunpack.c.l.b16 %v2176
    %v2252 = vunpack.c.l.b16 %v2177
    %v2253 = vunpack.c.l.b16 %v2178
    %v2254 = vunpack.c.l.b16 %v2179
    %v2255 = vunpack.c.l.b16 %v2180
    %v2256 = vunpack.c.l.b16 %v2181
    %v2257 = vunpack.c.l.b16 %v2182
    %v2258 = vunpack.c.l.b16 %v2183
    %v2259 = vunpack.c.l.b16 %v2184
    %v2260 = vunpack.c.l.b16 %v2185
    %v2261 = vunpack.c.l.b16 %v2186
    %v2262 = vunpack.c.l.b16 %v2187
    %v2263 = vunpack.c.l.b16 %v2188
    %v2264 = vunpack.c.l.b16 %v2189
    %v2265 = vunpack.c.l.b16 %v2190
    %v2266 = vunpack.c.l.b16 %v2191
    %v2267 = vunpack.c.l.b16 %v2192
    %v2268 = vunpack.c.l.b16 %v2193
    %v2269 = vunpack.c.l.b16 %v2194
    %v2270 = vunpack.c.l.b16 %v2195
    %v2271 = vunpack.c.l.b16 %v2196
    %v2272 = vunpack.c.l.b16 %v2197
    %v2273 = vunpack.c.l.b16 %v2198
    %v2274 = vpack.c.b16 %v2243, %v2242
    %v2275 = vpack.c.b16 %v2245, %v2244
    %v2276 = vpack.c.b16 %v2247, %v2246
    %v2277 = vpack.c.b16 %v2249, %v2248
    %v2278 = vpack.c.b16 %v2251, %v2250
    %v2279 = vpack.c.b16 %v2253, %v2252
    %v2280 = vpack.c.b16 %v2255, %v2254
    %v2281 = vpack.c.b16 %v2257, %v2256
    %v2282 = vpack.c.b16 %v2259, %v2258
    %v2283 = vpack.c.b16 %v2261, %v2260
    %v2284 = vpack.c.b16 %v2263, %v2262
    %v2285 = vpack.c.b16 %v2265, %v2264
    %v2286 = vpack.c.b16 %v2267, %v2266
    %v2287 = vpack.c.b16 %v2269, %v2268
    %v2288 = vpack.c.b16 %v2271, %v2270
    %v2289 = vpack.c.b16 %v2273, %v2272
    %2306 = vmatprep.subr.bf16.mxu0 0
    %2307 = vmatpush1.bf16.msra.mxu0 %v2274
    %2308 = vmatprep.subr.bf16.mxu0 0
    %2309 = vmatpush1.bf16.msra.mxu0 %v2275
    %2310 = vmatprep.subr.bf16.mxu0 0
    %2311 = vmatpush1.bf16.msra.mxu0 %v2276
    %2312 = vmatprep.subr.bf16.mxu0 0
    %2313 = vmatpush1.bf16.msra.mxu0 %v2277
    %2314 = vmatprep.subr.bf16.mxu0 0
    %2315 = vmatpush1.bf16.msra.mxu0 %v2278
    %2316 = vmatprep.subr.bf16.mxu0 0
    %2317 = vmatpush1.bf16.msra.mxu0 %v2279
    %2318 = vmatprep.subr.bf16.mxu0 0
    %2319 = vmatpush1.bf16.msra.mxu0 %v2280
    %2320 = vmatprep.subr.bf16.mxu0 0
    %2321 = vmatpush1.bf16.msra.mxu0 %v2281
    %2322 = vmatprep.subr.bf16.mxu0 0
    %2323 = vmatpush1.bf16.msra.mxu0 %v2282
    %2324 = vmatprep.subr.bf16.mxu0 0
    %2325 = vmatpush1.bf16.msra.mxu0 %v2283
    %2326 = vmatprep.subr.bf16.mxu0 0
    %2327 = vmatpush1.bf16.msra.mxu0 %v2284
    %2328 = vmatprep.subr.bf16.mxu0 0
    %2329 = vmatpush1.bf16.msra.mxu0 %v2285
    %2330 = vmatprep.subr.bf16.mxu0 0
    %2331 = vmatpush1.bf16.msra.mxu0 %v2286
    %2332 = vmatprep.subr.bf16.mxu0 0
    %2333 = vmatpush1.bf16.msra.mxu0 %v2287
    %2334 = vmatprep.subr.bf16.mxu0 0
    %2335 = vmatpush1.bf16.msra.mxu0 %v2288
    %2336 = vmatprep.subr.bf16.mxu0 0
    %2337 = vmatpush1.bf16.msra.mxu0 %v2289
    %2338 = vmatprep.mubr.bf16.mxu0 %v2203
    %2339 = vmatmul.mubr.bf16.gmra.mrb[0].mxu0 %v2202
    %v2340 = vpop.f32.mrb[0].mxu0
    %v2341 = vadd.f32 %v2208, %v2340
    %v2342 = vpop.f32.mrb[0].mxu0
    %v2343 = vpop.f32.mrb[0].mxu0
    %v2344 = vpop.f32.mrb[0].mxu0
    %2345 = vdwg.mxu0
    %v2346 = vld [vmem:[%s21] sm:$0xf]
    %v2347 = vld [vmem:[%s21 + $0x4] sm:$0xf]
    %v2348 = vld [vmem:[%s21 + $0x8] sm:$0xf]
    %v2349 = vld [vmem:[%s21 + $0xc] sm:$0xf]
    %v2350 = vld [vmem:[%s21 + $0x10] sm:$0xf]
    %v2351 = vld [vmem:[%s21 + $0x14] sm:$0xf]
    %v2352 = vld [vmem:[%s21 + $0x18] sm:$0xf]
    %v2353 = vld [vmem:[%s21 + $0x1c] sm:$0xf]
    %v2354 = vld [vmem:[%s21 + $0x20] sm:$0xf]
    %v2355 = vld [vmem:[%s21 + $0x24] sm:$0xf]
    %v2356 = vld [vmem:[%s21 + $0x28] sm:$0xf]
    %v2357 = vld [vmem:[%s21 + $0x2c] sm:$0xf]
    %v2358 = vld [vmem:[%s21 + $0x30] sm:$0xf]
    %v2359 = vld [vmem:[%s21 + $0x34] sm:$0xf]
    %v2360 = vld [vmem:[%s21 + $0x38] sm:$0xf]
    %v2361 = vld [vmem:[%s21 + $0x3c] sm:$0xf]
    %v2362 = vld [vmem:[%s22] sm:$0x1]
    %v2363 = vmax.f32 %v2341, 0.0
    %v2364 = vpack.c.bf16 %v2363, %v2363
    %v2366 = vlaneseq
    %v2367 = vshrl.u32 %v2366, 7
    %v2368 = vsub.s32 0, %v2367
    %v2369 = vrot.slane %v2362, %v2368
    %v2387 = vunpack.c.l.b16 %v2346
    %v2388 = vunpack.c.l.b16 %v2347
    %v2389 = vunpack.c.l.b16 %v2348
    %v2390 = vunpack.c.l.b16 %v2349
    %v2391 = vunpack.c.l.b16 %v2350
    %v2392 = vunpack.c.l.b16 %v2351
    %v2393 = vunpack.c.l.b16 %v2352
    %v2394 = vunpack.c.l.b16 %v2353
    %v2395 = vunpack.c.l.b16 %v2354
    %v2396 = vunpack.c.l.b16 %v2355
    %v2397 = vunpack.c.l.b16 %v2356
    %v2398 = vunpack.c.l.b16 %v2357
    %v2399 = vunpack.c.l.b16 %v2358
    %v2400 = vunpack.c.l.b16 %v2359
    %v2401 = vunpack.c.l.b16 %v2360
    %v2402 = vunpack.c.l.b16 %v2361
    %v2403 = vpack.c.b16 %v2388, %v2387
    %v2404 = vpack.c.b16 %v2390, %v2389
    %v2405 = vpack.c.b16 %v2392, %v2391
    %v2406 = vpack.c.b16 %v2394, %v2393
    %v2407 = vpack.c.b16 %v2396, %v2395
    %v2408 = vpack.c.b16 %v2398, %v2397
    %v2409 = vpack.c.b16 %v2400, %v2399
    %v2410 = vpack.c.b16 %v2402, %v2401
    %2419 = vmatprep.subr.bf16.mxu0 0
    %2420 = vmatpush1.bf16.msra.mxu0 %v2403
    %2421 = vmatprep.subr.bf16.mxu0 0
    %2422 = vmatpush1.bf16.msra.mxu0 %v2404
    %2423 = vmatprep.subr.bf16.mxu0 0
    %2424 = vmatpush1.bf16.msra.mxu0 %v2405
    %2425 = vmatprep.subr.bf16.mxu0 0
    %2426 = vmatpush1.bf16.msra.mxu0 %v2406
    %2427 = vmatprep.subr.bf16.mxu0 0
    %2428 = vmatpush1.bf16.msra.mxu0 %v2407
    %2429 = vmatprep.subr.bf16.mxu0 0
    %2430 = vmatpush1.bf16.msra.mxu0 %v2408
    %2431 = vmatprep.subr.bf16.mxu0 0
    %2432 = vmatpush1.bf16.msra.mxu0 %v2409
    %2433 = vmatprep.subr.bf16.mxu0 0
    %2434 = vmatpush1.bf16.msra.mxu0 %v2410
    %2435 = vmatprep.subr.bf16.mxu0 0
    %2436 = vmatpush1.bf16.msra.mxu0 0
    %2437 = vmatprep.subr.bf16.mxu0 0
    %2438 = vmatpush1.bf16.msra.mxu0 0
    %2439 = vmatprep.subr.bf16.mxu0 0
    %2440 = vmatpush1.bf16.msra.mxu0 0
    %2441 = vmatprep.subr.bf16.mxu0 0
    %2442 = vmatpush1.bf16.msra.mxu0 0
    %2443 = vmatprep.subr.bf16.mxu0 0
    %2444 = vmatpush1.bf16.msra.mxu0 0
    %2445 = vmatprep.subr.bf16.mxu0 0
    %2446 = vmatpush1.bf16.msra.mxu0 0
    %2447 = vmatprep.subr.bf16.mxu0 0
    %2448 = vmatpush1.bf16.msra.mxu0 0
    %2449 = vmatprep.subr.bf16.mxu0 0
    %2450 = vmatpush1.bf16.msra.mxu0 0
    %2451 = vmatprep.mubr.bf16.mxu0 0
    %2452 = vmatmul.mubr.bf16.gmra.mrb[0].mxu0 %v2364
    %v2453 = vpop.f32.mrb[0].mxu0
    %v2454 = vadd.f32 %v2369, %v2453
    %v2455 = vpop.f32.mrb[0].mxu0
    %v2456 = vpop.f32.mrb[0].mxu0
    %v2457 = vpop.f32.mrb[0].mxu0
    %2458 = vdwg.mxu0
    %v2459 = vld [vmem:[#allocation31] sm:$0xf]
    %v2460 = vld [vmem:[#allocation31 + $0x4] sm:$0xf]
    %v2461 = vld [vmem:[#allocation31 + $0x8] sm:$0xf]
    %v2462 = vld [vmem:[#allocation31 + $0xc] sm:$0xf]
    %v2463 = vld [vmem:[#allocation31 + $0x10] sm:$0xf]
    %v2464 = vld [vmem:[#allocation31 + $0x14] sm:$0xf]
    %v2465 = vld [vmem:[#allocation31 + $0x18] sm:$0xf]
    %v2466 = vld [vmem:[#allocation31 + $0x1c] sm:$0xf]
    %v2467 = vld [vmem:[%s24] sm:$0x1]
    %v2468 = vmax.f32 %v2454, 0.0
    %v2469 = vpack.c.bf16 %v2468, %v2468
    %v2471 = vlaneseq
    %v2472 = vshrl.u32 %v2471, 7
    %v2473 = vsub.s32 0, %v2472
    %v2474 = vrot.slane %v2467, %v2473
    %v2484 = vunpack.c.l.b16 %v2459
    %v2485 = vunpack.c.l.b16 %v2460
    %v2486 = vunpack.c.l.b16 %v2461
    %v2487 = vunpack.c.l.b16 %v2462
    %v2488 = vunpack.c.l.b16 %v2463
    %v2489 = vunpack.c.l.b16 %v2464
    %v2490 = vunpack.c.l.b16 %v2465
    %v2491 = vunpack.c.l.b16 %v2466
    %v2492 = vpack.c.b16 %v2485, %v2484
    %v2493 = vpack.c.b16 %v2487, %v2486
    %v2494 = vpack.c.b16 %v2489, %v2488
    %v2495 = vpack.c.b16 %v2491, %v2490
    %vm2500 = vcmask 523264
    %v2502 = vsel %vm2500, %v2469, 0
    %2504 = vmatprep.subr.bf16.mxu0 0
    %2505 = vmatpush1.bf16.msra.mxu0 %v2492
    %2506 = vmatprep.subr.bf16.mxu0 0
    %2507 = vmatpush1.bf16.msra.mxu0 %v2493
    %2508 = vmatprep.subr.bf16.mxu0 0
    %2509 = vmatpush1.bf16.msra.mxu0 %v2494
    %2510 = vmatprep.subr.bf16.mxu0 0
    %2511 = vmatpush1.bf16.msra.mxu0 %v2495
    %2512 = vmatprep.subr.bf16.mxu0 0
    %2513 = vmatpush1.bf16.msra.mxu0 0
    %2514 = vmatprep.subr.bf16.mxu0 0
    %2515 = vmatpush1.bf16.msra.mxu0 0
    %2516 = vmatprep.subr.bf16.mxu0 0
    %2517 = vmatpush1.bf16.msra.mxu0 0
    %2518 = vmatprep.subr.bf16.mxu0 0
    %2519 = vmatpush1.bf16.msra.mxu0 0
    %2520 = vmatprep.subr.bf16.mxu0 0
    %2521 = vmatpush1.bf16.msra.mxu0 0
    %2522 = vmatprep.subr.bf16.mxu0 0
    %2523 = vmatpush1.bf16.msra.mxu0 0
    %2524 = vmatprep.subr.bf16.mxu0 0
    %2525 = vmatpush1.bf16.msra.mxu0 0
    %2526 = vmatprep.subr.bf16.mxu0 0
    %2527 = vmatpush1.bf16.msra.mxu0 0
    %2528 = vmatprep.subr.bf16.mxu0 0
    %2529 = vmatpush1.bf16.msra.mxu0 0
    %2530 = vmatprep.subr.bf16.mxu0 0
    %2531 = vmatpush1.bf16.msra.mxu0 0
    %2532 = vmatprep.subr.bf16.mxu0 0
    %2533 = vmatpush1.bf16.msra.mxu0 0
    %2534 = vmatprep.subr.bf16.mxu0 0
    %2535 = vmatpush1.bf16.msra.mxu0 0
    %2536 = vmatprep.mubr.bf16.mxu0 0
    %2537 = vmatmul.mubr.bf16.gmra.mrb[0].mxu0 %v2502
    %v2538 = vpop.f32.mrb[0].mxu0
    %v2539 = vadd.f32 %v2474, %v2538
    %v2540 = vpop.f32.mrb[0].mxu0
    %v2541 = vpop.f32.mrb[0].mxu0
    %v2542 = vpop.f32.mrb[0].mxu0
    %2543 = vdwg.mxu0
    %2544 = vst [vmem:[#allocation32] sm:$0xff] %v2539
    // Predicated region
    $region178: #{tpu_custom_call.1} parent=1 // pred_check
      _
    $region179: #{tpu_custom_call.1} parent=1 // pred_check_branch
      %2546 = sbr.rel (0) target = $region181
    $region180: #{tpu_custom_call.1} parent=1 // pred_region
      %s2548 = ssub.s32 128, 128
      %2549 = vsyncadd [#allocation4], %s2548
      %s2551 = sshll.u32 [#allocation32], 4
      %s2552 = int_to_ptr.vmem [resolvable:$true] %s2551
      %2554 = dma.vmem_to_hbm [thread:$0]  %s2552, 128, %s25, [#allocation4]
    $region181: #{tpu_custom_call.1} parent=1 // pred_fallthru
      _
    // Predicated region
    $region182: #{tpu_custom_call.1} parent=1 // pred_check
      _
    $region183: #{tpu_custom_call.1} parent=1 // pred_check_branch
      %2556 = sbr.rel (0) target = $region185
    $region184: #{tpu_custom_call.1} parent=1 // pred_region
      %2557 = dma.done [#allocation4], 128
    $region185: #{tpu_custom_call.1} parent=1 // pred_fallthru
      _
    %2558 = vsyncpa [#allocation3], 1
    %2559 = vsyncpa [#allocation6], 1
    %2560 = vsyncpa [#allocation9], 1
    %2561 = vsyncpa [#allocation12], 1
    %2562 = vsyncpa [#allocation15], 1
    %2563 = vsyncpa [#allocation18], 1
    %2564 = vsyncpa [#allocation21], 1
    %2565 = vsyncpa [#allocation24], 1
    %2566 = vsyncpa [#allocation27], 1
    %2567 = vsyncpa [#allocation30], 1
    %2568 = vsyncpa [#allocation4], 1

</llo_original>
